<compile_context>
chip_gen: v5e
topology: v5e:2x2
jax: 0.10.0
libtpu: 0.0.40
codegen_flags: <defaults>
</compile_context>

<pallas_src>
from functools import partial

import jax
import jax.numpy as jnp
from jax.experimental import pallas as pl
from jax.experimental.pallas import tpu as pltpu


# --------------------------- parameter slab layout ---------------------------

def _slab_layout(f_in, gnn, les, n_layers):
    """Row offsets of each weight/bias block inside the single param slab."""
    off_conv = 0
    off_fc = off_conv + f_in + (n_layers - 1) * gnn
    off_qkv = off_fc + gnn
    off_rho = off_qkv + gnn
    off_b = off_rho + gnn + 2 * les
    n_rows = off_b + n_layers + 7          # conv biases + fc,q,k,v,rho1,rho2,rho3
    rows = -(-n_rows // 8) * 8             # pad to sublane multiple
    return off_conv, off_fc, off_qkv, off_rho, off_b, rows


# ------------------------------- forward pass --------------------------------

@partial(jax.jit, static_argnames=("gnn_dim", "lesets_dim", "n_conv_layers"))
def lesets_att_forward(p_slab, node_x, edge_index, edge_weight, batch, y,
                       *, gnn_dim, lesets_dim, n_conv_layers):
    N, F_IN = node_x.shape
    E = edge_index.shape[1]
    G = y.shape[0]
    GNN, LES, L = gnn_dim, lesets_dim, n_conv_layers
    OFF_CONV, OFF_FC, OFF_QKV, OFF_RHO, OFF_B, _ = _slab_layout(F_IN, GNN, LES, L)

    # ---- pack runtime inputs into 2 slabs (1 int32 + 1 f32) -----------------
    Wi = max(E, N)
    islab = jnp.zeros((2 + E, Wi), jnp.int32)
    islab = islab.at[0, :E].set(edge_index[1].astype(jnp.int32))       # dst row
    islab = islab.at[1, :N].set(batch.astype(jnp.int32))               # batch row
    islab = islab.at[2:2 + E, 0].set(edge_index[0].astype(jnp.int32))  # src column

    Wf = max(E, F_IN)
    fslab = jnp.zeros((1 + G + N, Wf), jnp.float32)
    fslab = fslab.at[0, :E].set(edge_weight.astype(jnp.float32))       # edge weights
    fslab = fslab.at[1:1 + G, 0].set(y.astype(jnp.float32))            # frac column
    fslab = fslab.at[1 + G:1 + G + N, :F_IN].set(node_x.astype(jnp.float32))

    HI = jax.lax.Precision.HIGHEST

    # ------------------------------ fused kernel -----------------------------
    def kernel(islab_ref, fslab_ref, p_ref, out_ref):
        f32 = jnp.float32

        dst = islab_ref[0:1, 0:E]                       # (1, E)
        bat = islab_ref[1:2, 0:N]                       # (1, N)
        src_col = islab_ref[2:2 + E, 0:1]               # (E, 1)
        ew = fslab_ref[0:1, 0:E]                        # (1, E)
        fr = fslab_ref[1:1 + G, 0:1]                    # (G, 1)
        x = fslab_ref[1 + G:1 + G + N, 0:F_IN]          # (N, F_IN)

        # --- dense GCN-normalized adjacency, scatter-free (iota + one MXU) ---
        Dw = (jax.lax.broadcasted_iota(jnp.int32, (N, E), 0) == dst).astype(f32) * ew
        S_T = (jax.lax.broadcasted_iota(jnp.int32, (E, N), 1) == src_col).astype(f32)
        eye = (jax.lax.broadcasted_iota(jnp.int32, (N, N), 0)
               == jax.lax.broadcasted_iota(jnp.int32, (N, N), 1)).astype(f32)
        # A[dst, src] = sum of edge weights; plain ((1,),(0,)) contraction.
        A = jnp.dot(Dw, S_T, preferred_element_type=f32, precision=HI) + eye
        deg = jnp.sum(A, axis=1, keepdims=True)                  # target in-degree
        dinv = jnp.where(deg > 0.0, 1.0 / jnp.sqrt(deg), 0.0)    # (N, 1)
        dinv_row = jnp.sum(eye * dinv, axis=0, keepdims=True)    # (1, N), no transpose
        A_hat = dinv * A * dinv_row                              # VPU, no extra MXU

        # --- phi: stacked GCNConv layers (Identity norm + ReLU) --------------
        h = x
        r = OFF_CONV
        for l in range(L):
            din = F_IN if l == 0 else GNN
            w = p_ref[r:r + din, 0:GNN]
            b = p_ref[OFF_B + l:OFF_B + l + 1, 0:GNN]
            h = jnp.dot(A_hat,
                        jnp.dot(h, w, preferred_element_type=f32, precision=HI),
                        preferred_element_type=f32, precision=HI) + b
            h = jnp.maximum(h, 0.0)
            r += din

        # --- phi: global_mean_pool + fc + tanh --------------------------------
        onehot = (jax.lax.broadcasted_iota(jnp.int32, (G, N), 0) == bat).astype(f32)
        cnt = jnp.sum(onehot, axis=1, keepdims=True)
        pool = onehot * jnp.where(cnt > 0.0, 1.0 / cnt, 0.0)
        pooled = jnp.dot(pool, h, preferred_element_type=f32, precision=HI)
        emb = jnp.tanh(jnp.dot(pooled, p_ref[OFF_FC:OFF_FC + GNN, 0:GNN],
                               preferred_element_type=f32, precision=HI)
                       + p_ref[OFF_B + L:OFF_B + L + 1, 0:GNN])

        # --- set attention: fused QKV matmul, softmax over dim 0 -------------
        qkv = jnp.dot(emb, p_ref[OFF_QKV:OFF_QKV + GNN, 0:3 * GNN],
                      preferred_element_type=f32, precision=HI)       # (G, 3*GNN)
        q = qkv[:, 0:GNN] + p_ref[OFF_B + L + 1:OFF_B + L + 2, 0:GNN]
        k = qkv[:, GNN:2 * GNN] + p_ref[OFF_B + L + 2:OFF_B + L + 3, 0:GNN]
        v = qkv[:, 2 * GNN:3 * GNN] + p_ref[OFF_B + L + 3:OFF_B + L + 4, 0:GNN]
        s = jax.lax.dot_general(q, k, (((1,), (1,)), ((), ())),
                                preferred_element_type=f32,
                                precision=HI) * (1.0 / (LES ** 0.5))
        m = jnp.max(s, axis=0, keepdims=True)
        p = jnp.exp(s - m)
        a = p / jnp.sum(p, axis=0, keepdims=True)        # exact softmax (no approx)
        o = jnp.dot(a, v, preferred_element_type=f32, precision=HI)   # (G, GNN)
        xg = jnp.sum(fr * o, axis=0, keepdims=True)      # frac pooling, no MXU

        # --- rho MLP ----------------------------------------------------------
        h1 = jnp.maximum(jnp.dot(xg, p_ref[OFF_RHO:OFF_RHO + GNN, 0:LES],
                                 preferred_element_type=f32, precision=HI)
                         + p_ref[OFF_B + L + 4:OFF_B + L + 5, 0:LES], 0.0)
        h2 = jnp.maximum(jnp.dot(h1, p_ref[OFF_RHO + GNN:OFF_RHO + GNN + LES, 0:LES],
                                 preferred_element_type=f32, precision=HI)
                         + p_ref[OFF_B + L + 5:OFF_B + L + 6, 0:LES], 0.0)
        out = jnp.dot(h2, p_ref[OFF_RHO + GNN + LES:OFF_RHO + GNN + 2 * LES, 0:LES],
                      preferred_element_type=f32, precision=HI)       # col 0 is real
        out_ref[...] = out[:, 0:1] + p_ref[OFF_B + L + 6:OFF_B + L + 7, 0:1]

    vmem = pl.BlockSpec(memory_space=pltpu.MemorySpace.VMEM)
    out = pl.pallas_call(
        kernel,
        out_shape=jax.ShapeDtypeStruct((1, 1), jnp.float32),
        in_specs=[vmem, vmem, vmem],
        out_specs=vmem,
    )(islab, fslab, p_slab)
    return out.reshape(1)        # matches torch: rho(...) of a 1-D vector -> (1,)


# ----------------------------- pure-JAX reference ----------------------------

def lesets_att_reference(raw, node_x, edge_index, edge_weight, batch, y):
    N = node_x.shape[0]
    G = y.shape[0]
    LES = raw["wq"].shape[1]

    ids = jnp.arange(N)
    S = (ids[:, None] == edge_index[0][None, :]).astype(jnp.float32)
    D = (ids[:, None] == edge_index[1][None, :]).astype(jnp.float32)
    A = (D * edge_weight[None, :]) @ S.T + jnp.eye(N, dtype=jnp.float32)
    deg = A.sum(1, keepdims=True)
    dinv = jnp.where(deg > 0, 1.0 / jnp.sqrt(deg), 0.0)
    A_hat = dinv * A * dinv.T

    h = node_x
    for w, b in zip(raw["conv_ws"], raw["conv_bs"]):
        h = jnp.maximum(A_hat @ (h @ w) + b, 0.0)

    onehot = (jnp.arange(G)[:, None] == batch[None, :]).astype(jnp.float32)
    P = onehot / jnp.maximum(onehot.sum(1, keepdims=True), 1.0)
    emb = jnp.tanh(P @ h @ raw["fc_w"] + raw["fc_b"])

    q = emb @ raw["wq"] + raw["bq"]
    k = emb @ raw["wk"] + raw["bk"]
    v = emb @ raw["wv"] + raw["bv"]
    att = jax.nn.softmax((q @ k.T) / (LES ** 0.5), axis=0)
    xg = y[None, :] @ (att @ v)
    h1 = jnp.maximum(xg @ raw["w1"] + raw["b1"], 0.0)
    h2 = jnp.maximum(h1 @ raw["w2"] + raw["b2"], 0.0)
    out = h2 @ raw["w3"] + raw["b3"]
    return out.reshape(1)


# -------------------------------- parameters ----------------------------------

def _linear(key, din, dout):
    kw, kb = jax.random.split(key)
    s = (1.0 / din) ** 0.5
    w = jax.random.uniform(kw, (din, dout), jnp.float32, -s, s)
    b = jax.random.uniform(kb, (dout,), jnp.float32, -s, s)
    return w, b


def init_params(key, n_node_features, gnn_dim, lesets_dim, n_conv_layers):
    assert gnn_dim >= lesets_dim
    ki = iter(jax.random.split(key, n_conv_layers + 7))
    dims = [n_node_features] + [gnn_dim] * n_conv_layers
    conv_ws, conv_bs = [], []
    for i in range(n_conv_layers):
        w, b = _linear(next(ki), dims[i], dims[i + 1])
        conv_ws.append(w); conv_bs.append(b)
    fc_w, fc_b = _linear(next(ki), gnn_dim, gnn_dim)
    wq, bq = _linear(next(ki), gnn_dim, lesets_dim)
    wk, bk = _linear(next(ki), gnn_dim, lesets_dim)
    wv, bv = _linear(next(ki), gnn_dim, gnn_dim)
    w1, b1 = _linear(next(ki), gnn_dim, lesets_dim)
    w2, b2 = _linear(next(ki), lesets_dim, lesets_dim)
    w3, b3 = _linear(next(ki), lesets_dim, 1)

    off_conv, off_fc, off_qkv, off_rho, off_b, rows = _slab_layout(
        n_node_features, gnn_dim, lesets_dim, n_conv_layers)

    # One row-stacked (rows, 3*GNN) slab holds everything.
    slab = jnp.zeros((rows, 3 * gnn_dim), jnp.float32)
    r = off_conv
    for w in conv_ws:
        slab = slab.at[r:r + w.shape[0], 0:gnn_dim].set(w)
        r += w.shape[0]
    slab = slab.at[off_fc:off_fc + gnn_dim, 0:gnn_dim].set(fc_w)
    # Column-fused QKV block: [Wq|0] [Wk|0] [Wv], each column block GNN wide.
    slab = slab.at[off_qkv:off_qkv + gnn_dim, 0:lesets_dim].set(wq)
    slab = slab.at[off_qkv:off_qkv + gnn_dim, gnn_dim:gnn_dim + lesets_dim].set(wk)
    slab = slab.at[off_qkv:off_qkv + gnn_dim, 2 * gnn_dim:3 * gnn_dim].set(wv)
    # rho weights (w3 padded to LES columns; only col 0 is real).
    slab = slab.at[off_rho:off_rho + gnn_dim, 0:lesets_dim].set(w1)
    slab = slab.at[off_rho + gnn_dim:off_rho + gnn_dim + lesets_dim,
                   0:lesets_dim].set(w2)
    slab = slab.at[off_rho + gnn_dim + lesets_dim:off_rho + gnn_dim + 2 * lesets_dim,
                   0:1].set(w3)
    # One bias row per linear (zero-padded lanes).
    for i, vec in enumerate(conv_bs + [fc_b, bq, bk, bv, b1, b2, b3]):
        slab = slab.at[off_b + i, 0:vec.shape[0]].set(vec)

    raw = dict(conv_ws=conv_ws, conv_bs=conv_bs, fc_w=fc_w, fc_b=fc_b,
               wq=wq, bq=bq, wk=wk, bk=bk, wv=wv, bv=bv,
               w1=w1, b1=b1, w2=w2, b2=b2, w3=w3, b3=b3)
    return dict(slab=slab, raw=raw)


# ---------------------------------- main --------------------------------------

if __name__ == "__main__":
    key = jax.random.PRNGKey(0)

    G, NODES_PER_GRAPH = 2, 8
    N = G * NODES_PER_GRAPH
    N_NODE_FEATURES, GNN_DIM, LESETS_DIM, N_CONV_LAYERS = 8, 32, 16, 2
    E_PER_GRAPH = 16

    k_x, k_e, k_w, k_y, k_p = jax.random.split(key, 5)

    node_x = jax.random.normal(k_x, (N, N_NODE_FEATURES), jnp.float32)

    src_list, dst_list = [], []
    graph_keys = jax.random.split(k_e, G)
    for g in range(G):
        ks, kd = jax.random.split(graph_keys[g])
        base = g * NODES_PER_GRAPH
        src_list.append(jax.random.randint(ks, (E_PER_GRAPH,), 0, NODES_PER_GRAPH) + base)
        dst_list.append(jax.random.randint(kd, (E_PER_GRAPH,), 0, NODES_PER_GRAPH) + base)
    edge_index = jnp.stack(
        [jnp.concatenate(src_list), jnp.concatenate(dst_list)]).astype(jnp.int32)
    edge_attr = jax.random.uniform(k_w, (edge_index.shape[1],), jnp.float32, 0.1, 1.0)

    batch = jnp.repeat(jnp.arange(G, dtype=jnp.int32), NODES_PER_GRAPH)
    y = jax.random.uniform(k_y, (G,), jnp.float32)     # mixture fractions

    params = init_params(k_p, N_NODE_FEATURES, GNN_DIM, LESETS_DIM, N_CONV_LAYERS)

    out = lesets_att_forward(params["slab"], node_x, edge_index, edge_attr, batch, y,
                             gnn_dim=GNN_DIM, lesets_dim=LESETS_DIM,
                             n_conv_layers=N_CONV_LAYERS)
    out = jax.block_until_ready(out)

    with jax.default_matmul_precision("highest"):
        ref = lesets_att_reference(params["raw"], node_x, edge_index, edge_attr,
                                   batch, y)
        ref = jax.block_until_ready(ref)

    assert out.shape == (1,) and bool(jnp.all(jnp.isfinite(out)))
    # Exact softmax reciprocal + HIGHEST-precision matmuls on both paths ->
    # tolerance tightened from the previous 1e-2 back to ~1e-5.
    assert jnp.allclose(out, ref, atol=1e-5, rtol=1e-4)
    print("KERNEL_OK")
</pallas_src>

<mosaic_0001>
module attributes {stable_mosaic.version = 11 : i64} {
  func.func @kernel(%arg0: memref<34x32xi32, #tpu.memory_space<vmem>>, %arg1: memref<19x32xf32, #tpu.memory_space<vmem>>, %arg2: memref<184x96xf32, #tpu.memory_space<vmem>>, %arg3: memref<1x1xf32, #tpu.memory_space<vmem>>) attributes {dimension_semantics = [], scalar_prefetch = 0 : i64, scratch_operands = 0 : i64, tpu.core_type = #tpu.core_type<tc>} {
    %c0 = arith.constant 0 : index
    %c0_0 = arith.constant 0 : index
    %0 = vector.load %arg0[%c0, %c0_0] : memref<34x32xi32, #tpu.memory_space<vmem>>, vector<1x32xi32>
    %c1 = arith.constant 1 : index
    %c0_1 = arith.constant 0 : index
    %1 = vector.load %arg0[%c1, %c0_1] : memref<34x32xi32, #tpu.memory_space<vmem>>, vector<1x16xi32>
    %c2 = arith.constant 2 : index
    %c0_2 = arith.constant 0 : index
    %2 = vector.load %arg0[%c2, %c0_2] : memref<34x32xi32, #tpu.memory_space<vmem>>, vector<32x1xi32>
    %c0_3 = arith.constant 0 : index
    %c0_4 = arith.constant 0 : index
    %3 = vector.load %arg1[%c0_3, %c0_4] : memref<19x32xf32, #tpu.memory_space<vmem>>, vector<1x32xf32>
    %c1_5 = arith.constant 1 : index
    %c0_6 = arith.constant 0 : index
    %4 = vector.load %arg1[%c1_5, %c0_6] : memref<19x32xf32, #tpu.memory_space<vmem>>, vector<2x1xf32>
    %c3 = arith.constant 3 : index
    %c0_7 = arith.constant 0 : index
    %5 = vector.load %arg1[%c3, %c0_7] : memref<19x32xf32, #tpu.memory_space<vmem>>, vector<16x8xf32>
    %6 = tpu.iota {dimensions = array<i32: 0>} : vector<16x32xi32>
    %7 = vector.broadcast %0 : vector<1x32xi32> to vector<16x32xi32>
    %8 = arith.cmpi eq, %6, %7 : vector<16x32xi32>
    %9 = arith.extui %8 : vector<16x32xi1> to vector<16x32xi32>
    %10 = arith.sitofp %9 : vector<16x32xi32> to vector<16x32xf32>
    %11 = vector.broadcast %3 : vector<1x32xf32> to vector<16x32xf32>
    %12 = arith.mulf %10, %11 : vector<16x32xf32>
    %13 = tpu.iota {dimensions = array<i32: 1>} : vector<32x16xi32>
    %14 = vector.broadcast %2 : vector<32x1xi32> to vector<32x16xi32>
    %15 = arith.cmpi eq, %13, %14 : vector<32x16xi32>
    %16 = arith.extui %15 : vector<32x16xi1> to vector<32x16xi32>
    %17 = arith.sitofp %16 : vector<32x16xi32> to vector<32x16xf32>
    %18 = tpu.iota {dimensions = array<i32: 0>} : vector<16x16xi32>
    %19 = tpu.iota {dimensions = array<i32: 1>} : vector<16x16xi32>
    %20 = arith.cmpi eq, %18, %19 : vector<16x16xi32>
    %21 = arith.extui %20 : vector<16x16xi1> to vector<16x16xi32>
    %22 = arith.sitofp %21 : vector<16x16xi32> to vector<16x16xf32>
    %cst = arith.constant dense<0.000000e+00> : vector<16x16xf32>
    %23 = tpu.matmul %12, %17, %cst {dimension_numbers = #tpu.dot_dimension_numbers<[1], [0], [0], [1], [0, 0, 1, 1], [], []>, precision = #tpu.contract_precision<fp32>} : vector<16x32xf32>, vector<32x16xf32>, vector<16x16xf32> -> vector<16x16xf32>
    %24 = arith.addf %23, %22 : vector<16x16xf32>
    %cst_8 = arith.constant dense<0.000000e+00> : vector<16xf32>
    %25 = vector.multi_reduction <add>, %24, %cst_8 [1] : vector<16x16xf32> to vector<16xf32>
    %26 = vector.shape_cast %25 : vector<16xf32> to vector<16x1xf32>
    %cst_9 = arith.constant 0.000000e+00 : f32
    %27 = vector.broadcast %cst_9 : f32 to vector<16x1xf32>
    %28 = arith.cmpf ogt, %26, %27 : vector<16x1xf32>
    %29 = math.sqrt %26 : vector<16x1xf32>
    %cst_10 = arith.constant 1.000000e+00 : f32
    %30 = vector.broadcast %cst_10 : f32 to vector<16x1xf32>
    %31 = arith.divf %30, %29 : vector<16x1xf32>
    %cst_11 = arith.constant 0.000000e+00 : f32
    %32 = vector.broadcast %cst_11 : f32 to vector<16x1xf32>
    %33 = arith.select %28, %31, %32 : vector<16x1xi1>, vector<16x1xf32>
    %34 = vector.broadcast %33 : vector<16x1xf32> to vector<16x16xf32>
    %35 = arith.mulf %22, %34 : vector<16x16xf32>
    %cst_12 = arith.constant dense<0.000000e+00> : vector<16xf32>
    %36 = vector.multi_reduction <add>, %35, %cst_12 [0] : vector<16x16xf32> to vector<16xf32>
    %37 = vector.shape_cast %36 : vector<16xf32> to vector<1x16xf32>
    %38 = vector.broadcast %33 : vector<16x1xf32> to vector<16x16xf32>
    %39 = arith.mulf %38, %24 : vector<16x16xf32>
    %40 = vector.broadcast %37 : vector<1x16xf32> to vector<16x16xf32>
    %41 = arith.mulf %39, %40 : vector<16x16xf32>
    %c0_13 = arith.constant 0 : index
    %c0_14 = arith.constant 0 : index
    %42 = vector.load %arg2[%c0_13, %c0_14] : memref<184x96xf32, #tpu.memory_space<vmem>>, vector<8x32xf32>
    %c168 = arith.constant 168 : index
    %c0_15 = arith.constant 0 : index
    %43 = vector.load %arg2[%c168, %c0_15] : memref<184x96xf32, #tpu.memory_space<vmem>>, vector<1x32xf32>
    %cst_16 = arith.constant dense<0.000000e+00> : vector<16x32xf32>
    %44 = tpu.matmul %5, %42, %cst_16 {dimension_numbers = #tpu.dot_dimension_numbers<[1], [0], [0], [1], [0, 0, 1, 1], [], []>, precision = #tpu.contract_precision<fp32>} : vector<16x8xf32>, vector<8x32xf32>, vector<16x32xf32> -> vector<16x32xf32>
    %cst_17 = arith.constant dense<0.000000e+00> : vector<16x32xf32>
    %45 = tpu.matmul %41, %44, %cst_17 {dimension_numbers = #tpu.dot_dimension_numbers<[1], [0], [0], [1], [0, 0, 1, 1], [], []>, precision = #tpu.contract_precision<fp32>} : vector<16x16xf32>, vector<16x32xf32>, vector<16x32xf32> -> vector<16x32xf32>
    %46 = vector.broadcast %43 : vector<1x32xf32> to vector<16x32xf32>
    %47 = arith.addf %45, %46 : vector<16x32xf32>
    %cst_18 = arith.constant 0.000000e+00 : f32
    %48 = vector.broadcast %cst_18 : f32 to vector<16x32xf32>
    %49 = arith.maximumf %47, %48 : vector<16x32xf32>
    %c8 = arith.constant 8 : index
    %c0_19 = arith.constant 0 : index
    %50 = vector.load %arg2[%c8, %c0_19] : memref<184x96xf32, #tpu.memory_space<vmem>>, vector<32x32xf32>
    %c169 = arith.constant 169 : index
    %c0_20 = arith.constant 0 : index
    %51 = vector.load %arg2[%c169, %c0_20] : memref<184x96xf32, #tpu.memory_space<vmem>>, vector<1x32xf32>
    %cst_21 = arith.constant dense<0.000000e+00> : vector<16x32xf32>
    %52 = tpu.matmul %49, %50, %cst_21 {dimension_numbers = #tpu.dot_dimension_numbers<[1], [0], [0], [1], [0, 0, 1, 1], [], []>, precision = #tpu.contract_precision<fp32>} : vector<16x32xf32>, vector<32x32xf32>, vector<16x32xf32> -> vector<16x32xf32>
    %cst_22 = arith.constant dense<0.000000e+00> : vector<16x32xf32>
    %53 = tpu.matmul %41, %52, %cst_22 {dimension_numbers = #tpu.dot_dimension_numbers<[1], [0], [0], [1], [0, 0, 1, 1], [], []>, precision = #tpu.contract_precision<fp32>} : vector<16x16xf32>, vector<16x32xf32>, vector<16x32xf32> -> vector<16x32xf32>
    %54 = vector.broadcast %51 : vector<1x32xf32> to vector<16x32xf32>
    %55 = arith.addf %53, %54 : vector<16x32xf32>
    %cst_23 = arith.constant 0.000000e+00 : f32
    %56 = vector.broadcast %cst_23 : f32 to vector<16x32xf32>
    %57 = arith.maximumf %55, %56 : vector<16x32xf32>
    %58 = tpu.iota {dimensions = array<i32: 0>} : vector<2x16xi32>
    %59 = vector.broadcast %1 : vector<1x16xi32> to vector<2x16xi32>
    %60 = arith.cmpi eq, %58, %59 : vector<2x16xi32>
    %61 = arith.extui %60 : vector<2x16xi1> to vector<2x16xi32>
    %62 = arith.sitofp %61 : vector<2x16xi32> to vector<2x16xf32>
    %cst_24 = arith.constant dense<0.000000e+00> : vector<2xf32>
    %63 = vector.multi_reduction <add>, %62, %cst_24 [1] : vector<2x16xf32> to vector<2xf32>
    %64 = vector.shape_cast %63 : vector<2xf32> to vector<2x1xf32>
    %cst_25 = arith.constant 0.000000e+00 : f32
    %65 = vector.broadcast %cst_25 : f32 to vector<2x1xf32>
    %66 = arith.cmpf ogt, %64, %65 : vector<2x1xf32>
    %cst_26 = arith.constant 1.000000e+00 : f32
    %67 = vector.broadcast %cst_26 : f32 to vector<2x1xf32>
    %68 = arith.divf %67, %64 : vector<2x1xf32>
    %cst_27 = arith.constant 0.000000e+00 : f32
    %69 = vector.broadcast %cst_27 : f32 to vector<2x1xf32>
    %70 = arith.select %66, %68, %69 : vector<2x1xi1>, vector<2x1xf32>
    %71 = vector.broadcast %70 : vector<2x1xf32> to vector<2x16xf32>
    %72 = arith.mulf %62, %71 : vector<2x16xf32>
    %cst_28 = arith.constant dense<0.000000e+00> : vector<2x32xf32>
    %73 = tpu.matmul %72, %57, %cst_28 {dimension_numbers = #tpu.dot_dimension_numbers<[1], [0], [0], [1], [0, 0, 1, 1], [], []>, precision = #tpu.contract_precision<fp32>} : vector<2x16xf32>, vector<16x32xf32>, vector<2x32xf32> -> vector<2x32xf32>
    %c40 = arith.constant 40 : index
    %c0_29 = arith.constant 0 : index
    %74 = vector.load %arg2[%c40, %c0_29] : memref<184x96xf32, #tpu.memory_space<vmem>>, vector<32x32xf32>
    %cst_30 = arith.constant dense<0.000000e+00> : vector<2x32xf32>
    %75 = tpu.matmul %73, %74, %cst_30 {dimension_numbers = #tpu.dot_dimension_numbers<[1], [0], [0], [1], [0, 0, 1, 1], [], []>, precision = #tpu.contract_precision<fp32>} : vector<2x32xf32>, vector<32x32xf32>, vector<2x32xf32> -> vector<2x32xf32>
    %c170 = arith.constant 170 : index
    %c0_31 = arith.constant 0 : index
    %76 = vector.load %arg2[%c170, %c0_31] : memref<184x96xf32, #tpu.memory_space<vmem>>, vector<1x32xf32>
    %77 = vector.broadcast %76 : vector<1x32xf32> to vector<2x32xf32>
    %78 = arith.addf %75, %77 : vector<2x32xf32>
    %79 = math.tanh %78 : vector<2x32xf32>
    %c72 = arith.constant 72 : index
    %c0_32 = arith.constant 0 : index
    %80 = vector.load %arg2[%c72, %c0_32] : memref<184x96xf32, #tpu.memory_space<vmem>>, vector<32x96xf32>
    %cst_33 = arith.constant dense<0.000000e+00> : vector<2x96xf32>
    %81 = tpu.matmul %79, %80, %cst_33 {dimension_numbers = #tpu.dot_dimension_numbers<[1], [0], [0], [1], [0, 0, 1, 1], [], []>, precision = #tpu.contract_precision<fp32>} : vector<2x32xf32>, vector<32x96xf32>, vector<2x96xf32> -> vector<2x96xf32>
    %82 = vector.extract_strided_slice %81 {offsets = [0, 0], sizes = [2, 32], strides = [1, 1]} : vector<2x96xf32> to vector<2x32xf32>
    %c171 = arith.constant 171 : index
    %c0_34 = arith.constant 0 : index
    %83 = vector.load %arg2[%c171, %c0_34] : memref<184x96xf32, #tpu.memory_space<vmem>>, vector<1x32xf32>
    %84 = vector.broadcast %83 : vector<1x32xf32> to vector<2x32xf32>
    %85 = arith.addf %82, %84 : vector<2x32xf32>
    %86 = vector.extract_strided_slice %81 {offsets = [0, 32], sizes = [2, 32], strides = [1, 1]} : vector<2x96xf32> to vector<2x32xf32>
    %c172 = arith.constant 172 : index
    %c0_35 = arith.constant 0 : index
    %87 = vector.load %arg2[%c172, %c0_35] : memref<184x96xf32, #tpu.memory_space<vmem>>, vector<1x32xf32>
    %88 = vector.broadcast %87 : vector<1x32xf32> to vector<2x32xf32>
    %89 = arith.addf %86, %88 : vector<2x32xf32>
    %90 = vector.extract_strided_slice %81 {offsets = [0, 64], sizes = [2, 32], strides = [1, 1]} : vector<2x96xf32> to vector<2x32xf32>
    %c173 = arith.constant 173 : index
    %c0_36 = arith.constant 0 : index
    %91 = vector.load %arg2[%c173, %c0_36] : memref<184x96xf32, #tpu.memory_space<vmem>>, vector<1x32xf32>
    %92 = vector.broadcast %91 : vector<1x32xf32> to vector<2x32xf32>
    %93 = arith.addf %90, %92 : vector<2x32xf32>
    %cst_37 = arith.constant dense<0.000000e+00> : vector<2x2xf32>
    %94 = tpu.matmul %85, %89, %cst_37 {dimension_numbers = #tpu.dot_dimension_numbers<[1], [1], [0], [0], [0, 0, 1, 0], [], []>, precision = #tpu.contract_precision<fp32>} : vector<2x32xf32>, vector<2x32xf32>, vector<2x2xf32> -> vector<2x2xf32>
    %cst_38 = arith.constant 2.500000e-01 : f32
    %95 = vector.broadcast %cst_38 : f32 to vector<2x2xf32>
    %96 = arith.mulf %94, %95 : vector<2x2xf32>
    %cst_39 = arith.constant dense<0xFF800000> : vector<2xf32>
    %97 = vector.multi_reduction <maximumf>, %96, %cst_39 [0] : vector<2x2xf32> to vector<2xf32>
    %98 = vector.shape_cast %97 : vector<2xf32> to vector<1x2xf32>
    %99 = vector.broadcast %98 : vector<1x2xf32> to vector<2x2xf32>
    %100 = arith.subf %96, %99 : vector<2x2xf32>
    %101 = math.exp %100 : vector<2x2xf32>
    %cst_40 = arith.constant dense<0.000000e+00> : vector<2xf32>
    %102 = vector.multi_reduction <add>, %101, %cst_40 [0] : vector<2x2xf32> to vector<2xf32>
    %103 = vector.shape_cast %102 : vector<2xf32> to vector<1x2xf32>
    %104 = vector.broadcast %103 : vector<1x2xf32> to vector<2x2xf32>
    %105 = arith.divf %101, %104 : vector<2x2xf32>
    %cst_41 = arith.constant dense<0.000000e+00> : vector<2x32xf32>
    %106 = tpu.matmul %105, %93, %cst_41 {dimension_numbers = #tpu.dot_dimension_numbers<[1], [0], [0], [1], [0, 0, 1, 1], [], []>, precision = #tpu.contract_precision<fp32>} : vector<2x2xf32>, vector<2x32xf32>, vector<2x32xf32> -> vector<2x32xf32>
    %107 = vector.broadcast %4 : vector<2x1xf32> to vector<2x32xf32>
    %108 = arith.mulf %107, %106 : vector<2x32xf32>
    %cst_42 = arith.constant dense<0.000000e+00> : vector<32xf32>
    %109 = vector.multi_reduction <add>, %108, %cst_42 [0] : vector<2x32xf32> to vector<32xf32>
    %110 = vector.shape_cast %109 : vector<32xf32> to vector<1x32xf32>
    %c104 = arith.constant 104 : index
    %c0_43 = arith.constant 0 : index
    %111 = vector.load %arg2[%c104, %c0_43] : memref<184x96xf32, #tpu.memory_space<vmem>>, vector<32x16xf32>
    %cst_44 = arith.constant dense<0.000000e+00> : vector<1x16xf32>
    %112 = tpu.matmul %110, %111, %cst_44 {dimension_numbers = #tpu.dot_dimension_numbers<[1], [0], [0], [1], [0, 0, 1, 1], [], []>, precision = #tpu.contract_precision<fp32>} : vector<1x32xf32>, vector<32x16xf32>, vector<1x16xf32> -> vector<1x16xf32>
    %c174 = arith.constant 174 : index
    %c0_45 = arith.constant 0 : index
    %113 = vector.load %arg2[%c174, %c0_45] : memref<184x96xf32, #tpu.memory_space<vmem>>, vector<1x16xf32>
    %114 = arith.addf %112, %113 : vector<1x16xf32>
    %cst_46 = arith.constant 0.000000e+00 : f32
    %115 = vector.broadcast %cst_46 : f32 to vector<1x16xf32>
    %116 = arith.maximumf %114, %115 : vector<1x16xf32>
    %c136 = arith.constant 136 : index
    %c0_47 = arith.constant 0 : index
    %117 = vector.load %arg2[%c136, %c0_47] : memref<184x96xf32, #tpu.memory_space<vmem>>, vector<16x16xf32>
    %cst_48 = arith.constant dense<0.000000e+00> : vector<1x16xf32>
    %118 = tpu.matmul %116, %117, %cst_48 {dimension_numbers = #tpu.dot_dimension_numbers<[1], [0], [0], [1], [0, 0, 1, 1], [], []>, precision = #tpu.contract_precision<fp32>} : vector<1x16xf32>, vector<16x16xf32>, vector<1x16xf32> -> vector<1x16xf32>
    %c175 = arith.constant 175 : index
    %c0_49 = arith.constant 0 : index
    %119 = vector.load %arg2[%c175, %c0_49] : memref<184x96xf32, #tpu.memory_space<vmem>>, vector<1x16xf32>
    %120 = arith.addf %118, %119 : vector<1x16xf32>
    %cst_50 = arith.constant 0.000000e+00 : f32
    %121 = vector.broadcast %cst_50 : f32 to vector<1x16xf32>
    %122 = arith.maximumf %120, %121 : vector<1x16xf32>
    %c152 = arith.constant 152 : index
    %c0_51 = arith.constant 0 : index
    %123 = vector.load %arg2[%c152, %c0_51] : memref<184x96xf32, #tpu.memory_space<vmem>>, vector<16x16xf32>
    %cst_52 = arith.constant dense<0.000000e+00> : vector<1x16xf32>
    %124 = tpu.matmul %122, %123, %cst_52 {dimension_numbers = #tpu.dot_dimension_numbers<[1], [0], [0], [1], [0, 0, 1, 1], [], []>, precision = #tpu.contract_precision<fp32>} : vector<1x16xf32>, vector<16x16xf32>, vector<1x16xf32> -> vector<1x16xf32>
    %125 = vector.extract_strided_slice %124 {offsets = [0, 0], sizes = [1, 1], strides = [1, 1]} : vector<1x16xf32> to vector<1x1xf32>
    %c176 = arith.constant 176 : index
    %c0_53 = arith.constant 0 : index
    %126 = vector.load %arg2[%c176, %c0_53] : memref<184x96xf32, #tpu.memory_space<vmem>>, vector<1x1xf32>
    %127 = arith.addf %125, %126 : vector<1x1xf32>
    %c0_54 = arith.constant 0 : index
    %c0_55 = arith.constant 0 : index
    %128 = vector.load %arg3[%c0_54, %c0_55] : memref<1x1xf32, #tpu.memory_space<vmem>>, vector<1x1xf32>
    tpu.vector_store %arg3[%c0_54, %c0_55], %127 {strides = array<i32>} : memref<1x1xf32, #tpu.memory_space<vmem>>, vector<1x1xf32>,
    return
  }
}

</mosaic_0001>

<llo_original>
// kernel: lesets_att_forward.1
$region0: #{lesets_att_forward.1}
  #allocation0 [shape = 'u32[]', space=smem, size = 0x4, offset = 0x4, fixed_abs, tag = 'smem constant byte address 0x4 - core index']
  #allocation1 [shape = 'u32[72,128]{1,0:T(1,128)}', space=vmem, size = 0x9000, scoped, tag = 'internal scratch']
  %s0 = inlined_call_operand.vmem [shape: s32[34,32], index: 0, kind: input, shape index: {}]
  %s1 = inlined_call_operand.vmem [shape: f32[19,32], index: 1, kind: input, shape index: {}]
  %s2 = inlined_call_operand.hbm [shape: f32[184,96], index: 2, kind: input, shape index: {}]
  %s3 = inlined_call_operand.hbm [shape: f32[1,1], index: 3, kind: output, shape index: {}]
  %s4 = sld [smem:[#allocation0]]
  $region26: #{lesets_att_forward.1} parent=0
    _
  %s6 = ssub.s32 1, %s4
  %s7 = scalar_select 0, %s6, %s4
  $region1: #{lesets_att_forward.1} parent=0
    #allocation2 [shape = 'u8[94208]{0}', space=vmem, size = 0x17000, scoped, tag = 'input window, operand 2, single buffered']
    #allocation3 [shape = 's32[1]{0}', space=sflag, size = 0x4, scoped, tag = 'scoped memory for lesets_att_forward.1']
    #allocation4 [shape = 's32[1]{0}', space=sflag, size = 0x4, scoped, tag = 'scoped memory for lesets_att_forward.1']
    #allocation5 [shape = 'u8[512]{0}', space=vmem, size = 0x400, scoped, tag = 'output window, operand 0, single buffered']
    %8 = vsyncpa [#allocation3], 0
    %9 = vsyncpa [#allocation4], 0
    // Predicated region
    $region2: #{lesets_att_forward.1} parent=1 // pred_check
      _
    $region3: #{lesets_att_forward.1} parent=1 // pred_check_branch
      %11 = sbr.rel (0) target = $region5
    $region4: #{lesets_att_forward.1} parent=1 // pred_region
      _
    $region5: #{lesets_att_forward.1} parent=1 // pred_fallthru
      _
    // Predicated region
    $region6: #{lesets_att_forward.1} parent=1 // pred_check
      _
    $region7: #{lesets_att_forward.1} parent=1 // pred_check_branch
      %13 = sbr.rel (0) target = $region9
    $region8: #{lesets_att_forward.1} parent=1 // pred_region
      _
    $region9: #{lesets_att_forward.1} parent=1 // pred_fallthru
      _
    // Predicated region
    $region10: #{lesets_att_forward.1} parent=1 // pred_check
      _
    $region11: #{lesets_att_forward.1} parent=1 // pred_check_branch
      %15 = sbr.rel (0) target = $region13
    $region12: #{lesets_att_forward.1} parent=1 // pred_region
      %17 = vsyncadd [#allocation3], 0
      %s18 = sshll.u32 %s2, 4
      %s19 = int_to_ptr.hbm [resolvable:$true] %s18
      %s20 = sshll.u32 [#allocation2], 4
      %s21 = int_to_ptr.vmem [resolvable:$true] %s20
      %26 = dma.hbm_to_vmem [thread:$0]  %s19, 2944, %s21, [#allocation3], 128, 128, 8
    $region13: #{lesets_att_forward.1} parent=1 // pred_fallthru
      _
    // Predicated region
    $region14: #{lesets_att_forward.1} parent=1 // pred_check
      _
    $region15: #{lesets_att_forward.1} parent=1 // pred_check_branch
      %28 = sbr.rel (0) target = $region17
    $region16: #{lesets_att_forward.1} parent=1 // pred_region
      %30 = dma.done [#allocation3], 2944
    $region17: #{lesets_att_forward.1} parent=1 // pred_fallthru
      _
    %v31 = vld [vmem:[%s0] sm:$0x1]
    %v32 = vld [vmem:[%s0 + $0x1] sm:$0x1]
    %v33 = vld [vmem:[%s0 + $0x2] sm:$0xff]
    %v34 = vld [vmem:[%s0 + $0xa] sm:$0xff]
    %v35 = vld [vmem:[%s0 + $0x12] sm:$0xff]
    %v36 = vld [vmem:[%s0 + $0x1a] sm:$0xff]
    %v37 = vld [vmem:[%s1] sm:$0x1]
    %v38 = vld [vmem:[%s1 + $0x1] sm:$0x3]
    %v39 = vld [vmem:[%s1 + $0x3] sm:$0xff]
    %v40 = vld [vmem:[%s1 + $0xb] sm:$0xff]
    %v41 = vlaneseq
    %v42 = vshrl.u32 %v41, 7
    %v43 = vadd.s32 %v42, 8
    %v44 = vperm.slane %v31, 0
    %vm45 = vcmp.eq.s32.totalorder %v42, %v44
    %vm46 = vcmp.eq.s32.totalorder %v43, %v44
    %v47 = vsel %vm45, 1, 0
    %v48 = vsel %vm46, 1, 0
    %v49 = vcvt.s32.f32 %v47
    %v50 = vcvt.s32.f32 %v48
    %v51 = vperm.slane %v37, 0
    %v52 = vmul.f32 %v49, %v51
    %v53 = vmul.f32 %v50, %v51
    %v54 = vlaneseq
    %v55 = vand.u32 %v54, 127
    %56 = vset.pattern.permute.xlu0 0
    %57 = vperm.xlu0 %56, %v33
    %v58 = vpop.permute.xlu0 %57
    %59 = vset.pattern.permute.xlu0 0
    %60 = vperm.xlu0 %59, %v34
    %v61 = vpop.permute.xlu0 %60
    %62 = vset.pattern.permute.xlu0 0
    %63 = vperm.xlu0 %62, %v35
    %v64 = vpop.permute.xlu0 %63
    %65 = vset.pattern.permute.xlu0 0
    %66 = vperm.xlu0 %65, %v36
    %v67 = vpop.permute.xlu0 %66
    %vm68 = vcmp.eq.s32.totalorder %v55, %v58
    %vm69 = vcmp.eq.s32.totalorder %v55, %v61
    %vm70 = vcmp.eq.s32.totalorder %v55, %v64
    %vm71 = vcmp.eq.s32.totalorder %v55, %v67
    %v72 = vsel %vm68, 1, 0
    %v73 = vsel %vm69, 1, 0
    %v74 = vsel %vm70, 1, 0
    %v75 = vsel %vm71, 1, 0
    %v76 = vcvt.s32.f32 %v72
    %v77 = vcvt.s32.f32 %v73
    %v78 = vcvt.s32.f32 %v74
    %v79 = vcvt.s32.f32 %v75
    %vm80 = vcmp.eq.s32.totalorder %v42, %v55
    %vm81 = vcmp.eq.s32.totalorder %v43, %v55
    %v82 = vsel %vm80, 1, 0
    %v83 = vsel %vm81, 1, 0
    %v84 = vcvt.s32.f32 %v82
    %v85 = vcvt.s32.f32 %v83
    %vm86 = vcmask 261120
    %v88 = vsel %vm86, %v52, 0
    %v91 = vsel %vm86, %v53, 0
    %93 = vmatpush.msra.mxu0 0.0
    %94 = vmatpush.msra.mxu0 0.0
    %95 = vmatpush.msra.mxu0 0.0
    %96 = vmatpush.msra.mxu0 0.0
    %97 = vmatpush.msra.mxu0 0.0
    %98 = vmatpush.msra.mxu0 0.0
    %99 = vmatpush.msra.mxu0 0.0
    %100 = vmatpush.msra.mxu0 0.0
    %101 = vmatpush.msra.mxu0 0.0
    %102 = vmatpush.msra.mxu0 0.0
    %103 = vmatpush.msra.mxu0 0.0
    %104 = vmatpush.msra.mxu0 0.0
    %v105 = vand.u32 %v79, 4294901760
    %106 = vmatpush.msra.mxu0 %v105
    %v107 = vand.u32 %v78, 4294901760
    %108 = vmatpush.msra.mxu0 %v107
    %v109 = vand.u32 %v77, 4294901760
    %110 = vmatpush.msra.mxu0 %v109
    %v111 = vand.u32 %v76, 4294901760
    %112 = vmatpush.msra.mxu0 %v111
    %v113 = vand.u32 %v88, 4294901760
    %v114 = vsub.f32 %v88, %v113
    %v115 = vand.u32 %v114, 4294901760
    %v116 = vsub.f32 %v114, %v115
    %v117 = vand.u32 %v116, 4294901760
    %118 = vmatmul.f32.gmra.mxu0 %v117
    %v119 = vpop.f32.mrf.mxu0
    %v120 = vadd.f32 %v84, %v119
    %v121 = vand.u32 %v91, 4294901760
    %v122 = vsub.f32 %v91, %v121
    %v123 = vand.u32 %v122, 4294901760
    %v124 = vsub.f32 %v122, %v123
    %v125 = vand.u32 %v124, 4294901760
    %126 = vmatmul.f32.gmra.mxu0 %v125
    %v127 = vpop.f32.mrf.mxu0
    %v128 = vadd.f32 %v85, %v127
    %129 = vdwg.mxu0
    %130 = vmatpush.msra.mxu0 0.0
    %131 = vmatpush.msra.mxu0 0.0
    %132 = vmatpush.msra.mxu0 0.0
    %133 = vmatpush.msra.mxu0 0.0
    %134 = vmatpush.msra.mxu0 0.0
    %135 = vmatpush.msra.mxu0 0.0
    %136 = vmatpush.msra.mxu0 0.0
    %137 = vmatpush.msra.mxu0 0.0
    %138 = vmatpush.msra.mxu0 0.0
    %139 = vmatpush.msra.mxu0 0.0
    %140 = vmatpush.msra.mxu0 0.0
    %141 = vmatpush.msra.mxu0 0.0
    %v142 = vand.u32 %v79, 4294901760
    %v143 = vsub.f32 %v79, %v142
    %v144 = vand.u32 %v143, 4294901760
    %v145 = vsub.f32 %v143, %v144
    %v146 = vand.u32 %v145, 4294901760
    %147 = vmatpush.msra.mxu0 %v146
    %v148 = vand.u32 %v78, 4294901760
    %v149 = vsub.f32 %v78, %v148
    %v150 = vand.u32 %v149, 4294901760
    %v151 = vsub.f32 %v149, %v150
    %v152 = vand.u32 %v151, 4294901760
    %153 = vmatpush.msra.mxu0 %v152
    %v154 = vand.u32 %v77, 4294901760
    %v155 = vsub.f32 %v77, %v154
    %v156 = vand.u32 %v155, 4294901760
    %v157 = vsub.f32 %v155, %v156
    %v158 = vand.u32 %v157, 4294901760
    %159 = vmatpush.msra.mxu0 %v158
    %v160 = vand.u32 %v76, 4294901760
    %v161 = vsub.f32 %v76, %v160
    %v162 = vand.u32 %v161, 4294901760
    %v163 = vsub.f32 %v161, %v162
    %v164 = vand.u32 %v163, 4294901760
    %165 = vmatpush.msra.mxu0 %v164
    %v166 = vand.u32 %v88, 4294901760
    %167 = vmatmul.f32.gmra.mxu0 %v166
    %v168 = vpop.f32.mrf.mxu0
    %v169 = vadd.f32 %v120, %v168
    %v170 = vand.u32 %v91, 4294901760
    %171 = vmatmul.f32.gmra.mxu0 %v170
    %v172 = vpop.f32.mrf.mxu0
    %v173 = vadd.f32 %v128, %v172
    %174 = vdwg.mxu0
    %175 = vmatpush.msra.mxu0 0.0
    %176 = vmatpush.msra.mxu0 0.0
    %177 = vmatpush.msra.mxu0 0.0
    %178 = vmatpush.msra.mxu0 0.0
    %179 = vmatpush.msra.mxu0 0.0
    %180 = vmatpush.msra.mxu0 0.0
    %181 = vmatpush.msra.mxu0 0.0
    %182 = vmatpush.msra.mxu0 0.0
    %183 = vmatpush.msra.mxu0 0.0
    %184 = vmatpush.msra.mxu0 0.0
    %185 = vmatpush.msra.mxu0 0.0
    %186 = vmatpush.msra.mxu0 0.0
    %v187 = vand.u32 %v79, 4294901760
    %v188 = vsub.f32 %v79, %v187
    %189 = vmatpush.msra.mxu0 %v188
    %v190 = vand.u32 %v78, 4294901760
    %v191 = vsub.f32 %v78, %v190
    %192 = vmatpush.msra.mxu0 %v191
    %v193 = vand.u32 %v77, 4294901760
    %v194 = vsub.f32 %v77, %v193
    %195 = vmatpush.msra.mxu0 %v194
    %v196 = vand.u32 %v76, 4294901760
    %v197 = vsub.f32 %v76, %v196
    %198 = vmatpush.msra.mxu0 %v197
    %v199 = vand.u32 %v88, 4294901760
    %v200 = vsub.f32 %v88, %v199
    %201 = vmatmul.f32.gmra.mxu0 %v200
    %v202 = vpop.f32.mrf.mxu0
    %v203 = vadd.f32 %v169, %v202
    %v204 = vand.u32 %v91, 4294901760
    %v205 = vsub.f32 %v91, %v204
    %206 = vmatmul.f32.gmra.mxu0 %v205
    %v207 = vpop.f32.mrf.mxu0
    %v208 = vadd.f32 %v173, %v207
    %209 = vdwg.mxu0
    %210 = vmatpush.msra.mxu0 0.0
    %211 = vmatpush.msra.mxu0 0.0
    %212 = vmatpush.msra.mxu0 0.0
    %213 = vmatpush.msra.mxu0 0.0
    %214 = vmatpush.msra.mxu0 0.0
    %215 = vmatpush.msra.mxu0 0.0
    %216 = vmatpush.msra.mxu0 0.0
    %217 = vmatpush.msra.mxu0 0.0
    %218 = vmatpush.msra.mxu0 0.0
    %219 = vmatpush.msra.mxu0 0.0
    %220 = vmatpush.msra.mxu0 0.0
    %221 = vmatpush.msra.mxu0 0.0
    %v222 = vand.u32 %v79, 4294901760
    %223 = vmatpush.msra.mxu0 %v222
    %v224 = vand.u32 %v78, 4294901760
    %225 = vmatpush.msra.mxu0 %v224
    %v226 = vand.u32 %v77, 4294901760
    %227 = vmatpush.msra.mxu0 %v226
    %v228 = vand.u32 %v76, 4294901760
    %229 = vmatpush.msra.mxu0 %v228
    %v230 = vand.u32 %v88, 4294901760
    %v231 = vsub.f32 %v88, %v230
    %v232 = vand.u32 %v231, 4294901760
    %233 = vmatmul.f32.gmra.mxu0 %v232
    %v234 = vpop.f32.mrf.mxu0
    %v235 = vadd.f32 %v203, %v234
    %v236 = vand.u32 %v91, 4294901760
    %v237 = vsub.f32 %v91, %v236
    %v238 = vand.u32 %v237, 4294901760
    %239 = vmatmul.f32.gmra.mxu0 %v238
    %v240 = vpop.f32.mrf.mxu0
    %v241 = vadd.f32 %v208, %v240
    %242 = vdwg.mxu0
    %243 = vmatpush.msra.mxu0 0.0
    %244 = vmatpush.msra.mxu0 0.0
    %245 = vmatpush.msra.mxu0 0.0
    %246 = vmatpush.msra.mxu0 0.0
    %247 = vmatpush.msra.mxu0 0.0
    %248 = vmatpush.msra.mxu0 0.0
    %249 = vmatpush.msra.mxu0 0.0
    %250 = vmatpush.msra.mxu0 0.0
    %251 = vmatpush.msra.mxu0 0.0
    %252 = vmatpush.msra.mxu0 0.0
    %253 = vmatpush.msra.mxu0 0.0
    %254 = vmatpush.msra.mxu0 0.0
    %v255 = vand.u32 %v79, 4294901760
    %v256 = vsub.f32 %v79, %v255
    %v257 = vand.u32 %v256, 4294901760
    %258 = vmatpush.msra.mxu0 %v257
    %v259 = vand.u32 %v78, 4294901760
    %v260 = vsub.f32 %v78, %v259
    %v261 = vand.u32 %v260, 4294901760
    %262 = vmatpush.msra.mxu0 %v261
    %v263 = vand.u32 %v77, 4294901760
    %v264 = vsub.f32 %v77, %v263
    %v265 = vand.u32 %v264, 4294901760
    %266 = vmatpush.msra.mxu0 %v265
    %v267 = vand.u32 %v76, 4294901760
    %v268 = vsub.f32 %v76, %v267
    %v269 = vand.u32 %v268, 4294901760
    %270 = vmatpush.msra.mxu0 %v269
    %v271 = vand.u32 %v88, 4294901760
    %272 = vmatmul.f32.gmra.mxu0 %v271
    %v273 = vpop.f32.mrf.mxu0
    %v274 = vadd.f32 %v235, %v273
    %v275 = vand.u32 %v91, 4294901760
    %276 = vmatmul.f32.gmra.mxu0 %v275
    %v277 = vpop.f32.mrf.mxu0
    %v278 = vadd.f32 %v241, %v277
    %279 = vdwg.mxu0
    %280 = vmatpush.msra.mxu0 0.0
    %281 = vmatpush.msra.mxu0 0.0
    %282 = vmatpush.msra.mxu0 0.0
    %283 = vmatpush.msra.mxu0 0.0
    %284 = vmatpush.msra.mxu0 0.0
    %285 = vmatpush.msra.mxu0 0.0
    %286 = vmatpush.msra.mxu0 0.0
    %287 = vmatpush.msra.mxu0 0.0
    %288 = vmatpush.msra.mxu0 0.0
    %289 = vmatpush.msra.mxu0 0.0
    %290 = vmatpush.msra.mxu0 0.0
    %291 = vmatpush.msra.mxu0 0.0
    %v292 = vand.u32 %v79, 4294901760
    %293 = vmatpush.msra.mxu0 %v292
    %v294 = vand.u32 %v78, 4294901760
    %295 = vmatpush.msra.mxu0 %v294
    %v296 = vand.u32 %v77, 4294901760
    %297 = vmatpush.msra.mxu0 %v296
    %v298 = vand.u32 %v76, 4294901760
    %299 = vmatpush.msra.mxu0 %v298
    %v300 = vand.u32 %v88, 4294901760
    %301 = vmatmul.f32.gmra.mxu0 %v300
    %v302 = vpop.f32.mrf.mxu0
    %v303 = vadd.f32 %v274, %v302
    %v304 = vand.u32 %v91, 4294901760
    %305 = vmatmul.f32.gmra.mxu0 %v304
    %v306 = vpop.f32.mrf.mxu0
    %v307 = vadd.f32 %v278, %v306
    %308 = vdwg.mxu0
    %vm309 = vcmask 130048
    %v310 = vsel %vm309, %v303, 0.0
    %311 = vadd.xlane.f32.xlu0 %v310
    %v312 = vpop.xlane.xlu0 %311
    %v313 = vsel %vm309, %v307, 0.0
    %314 = vadd.xlane.f32.xlu0 %v313
    %v315 = vpop.xlane.xlu0 %314
    %vm316 = vcmp.gt.f32.partialorder %v312, 0.0
    %vm317 = vcmp.gt.f32.partialorder %v315, 0.0
    %v318 = vrsqrt.pop %v312
    %v319 = vmul.f32 %v318, %v312
    %v320 = vmul.f32 %v319, %v318
    %v321 = vmul.f32 0.5, %v320
    %v322 = vsub.f32 1.5, %v321
    %v323 = vmul.f32 %v318, %v322
    %v324 = vmul.f32 %v312, %v323
    %vm325 = vcmp.eq.f32.partialorder %v312, inf
    %v326 = vsel %vm325, %v312, %v324
    %vm327 = vcmp.eq.f32.partialorder %v312, 0.0
    %v328 = vand.u32 %v312, 2147483648
    %v329 = vsel %vm327, %v328, %v326
    %v330 = vrsqrt.pop %v315
    %v331 = vmul.f32 %v330, %v315
    %v332 = vmul.f32 %v331, %v330
    %v333 = vmul.f32 0.5, %v332
    %v334 = vsub.f32 1.5, %v333
    %v335 = vmul.f32 %v330, %v334
    %v336 = vmul.f32 %v315, %v335
    %vm337 = vcmp.eq.f32.partialorder %v315, inf
    %v338 = vsel %vm337, %v315, %v336
    %vm339 = vcmp.eq.f32.partialorder %v315, 0.0
    %v340 = vand.u32 %v315, 2147483648
    %v341 = vsel %vm339, %v340, %v338
    %v342 = vrcp.pop %v329
    %v343 = vmul.f32 %v329, %v342
    %v344 = vsub.f32 1.0, %v343
    %v345 = vmul.f32 %v342, %v344
    %v346 = vadd.f32 %v342, %v345
    %vm347 = vweird.f32 %v329
    %vm348 = vweird.f32 %v342
    %vm349 = vmor %vm347, %vm348
    %v350 = vsel %vm349, %v342, %v346
    %v351 = vand.u32 2147483647, %v329
    %vm352 = vcmp.eq.f32.partialorder %v351, 8.507059e+37
    %v353 = vand.u32 %v329, 2147483648
    %v354 = vor.u32 1.1754944e-38, %v353
    %v355 = vsel %vm352, %v354, %v350
    %v356 = vmul.f32 1.0, %v355
    %v357 = vrcp.pop %v341
    %v358 = vmul.f32 %v341, %v357
    %v359 = vsub.f32 1.0, %v358
    %v360 = vmul.f32 %v357, %v359
    %v361 = vadd.f32 %v357, %v360
    %vm362 = vweird.f32 %v341
    %vm363 = vweird.f32 %v357
    %vm364 = vmor %vm362, %vm363
    %v365 = vsel %vm364, %v357, %v361
    %v366 = vand.u32 2147483647, %v341
    %vm367 = vcmp.eq.f32.partialorder %v366, 8.507059e+37
    %v368 = vand.u32 %v341, 2147483648
    %v369 = vor.u32 1.1754944e-38, %v368
    %v370 = vsel %vm367, %v369, %v365
    %v371 = vmul.f32 1.0, %v370
    %v372 = vsel %vm316, %v356, 0.0
    %v373 = vsel %vm317, %v371, 0.0
    %v374 = vmul.f32 %v84, %v372
    %v375 = vmul.f32 %v85, %v373
    %v376 = vsel %vm309, %v374, 0.0
    %v377 = vsel %vm309, %v375, 0.0
    %v378 = vadd.f32 %v376, %v377
    %v379 = vrot.slane %v378, 4
    %v380 = vadd.f32 %v378, %v379
    %v381 = vrot.slane %v380, 2
    %v382 = vadd.f32 %v380, %v381
    %v383 = vrot.slane %v382, 1
    %v384 = vadd.f32 %v382, %v383
    %v385 = vmul.f32 %v372, %v303
    %v386 = vmul.f32 %v373, %v307
    %v387 = vmul.f32 %v385, %v384
    %v388 = vmul.f32 %v386, %v384
    %v389 = vld [vmem:[#allocation2] sm:$0xff]
    %v390 = vld [vmem:[#allocation2 + $0xa8] sm:$0x1]
    %vm391 = vcmask 64512
    %v393 = vsel %vm391, %v39, 0
    %v396 = vsel %vm391, %v40, 0
    %398 = vmatpush.msra.mxu0 0.0
    %399 = vmatpush.msra.mxu0 0.0
    %400 = vmatpush.msra.mxu0 0.0
    %401 = vmatpush.msra.mxu0 0.0
    %402 = vmatpush.msra.mxu0 0.0
    %403 = vmatpush.msra.mxu0 0.0
    %404 = vmatpush.msra.mxu0 0.0
    %405 = vmatpush.msra.mxu0 0.0
    %406 = vmatpush.msra.mxu0 0.0
    %407 = vmatpush.msra.mxu0 0.0
    %408 = vmatpush.msra.mxu0 0.0
    %409 = vmatpush.msra.mxu0 0.0
    %410 = vmatpush.msra.mxu0 0.0
    %411 = vmatpush.msra.mxu0 0.0
    %412 = vmatpush.msra.mxu0 0.0
    %v413 = vand.u32 %v389, 4294901760
    %414 = vmatpush.msra.mxu0 %v413
    %v415 = vand.u32 %v393, 4294901760
    %v416 = vsub.f32 %v393, %v415
    %v417 = vand.u32 %v416, 4294901760
    %v418 = vsub.f32 %v416, %v417
    %v419 = vand.u32 %v418, 4294901760
    %420 = vmatmul.f32.gmra.mxu0 %v419
    %v421 = vpop.f32.mrf.mxu0
    %v422 = vadd.f32 0.0, %v421
    %v423 = vand.u32 %v396, 4294901760
    %v424 = vsub.f32 %v396, %v423
    %v425 = vand.u32 %v424, 4294901760
    %v426 = vsub.f32 %v424, %v425
    %v427 = vand.u32 %v426, 4294901760
    %428 = vmatmul.f32.gmra.mxu0 %v427
    %v429 = vpop.f32.mrf.mxu0
    %v430 = vadd.f32 0.0, %v429
    %431 = vdwg.mxu0
    %432 = vmatpush.msra.mxu0 0.0
    %433 = vmatpush.msra.mxu0 0.0
    %434 = vmatpush.msra.mxu0 0.0
    %435 = vmatpush.msra.mxu0 0.0
    %436 = vmatpush.msra.mxu0 0.0
    %437 = vmatpush.msra.mxu0 0.0
    %438 = vmatpush.msra.mxu0 0.0
    %439 = vmatpush.msra.mxu0 0.0
    %440 = vmatpush.msra.mxu0 0.0
    %441 = vmatpush.msra.mxu0 0.0
    %442 = vmatpush.msra.mxu0 0.0
    %443 = vmatpush.msra.mxu0 0.0
    %444 = vmatpush.msra.mxu0 0.0
    %445 = vmatpush.msra.mxu0 0.0
    %446 = vmatpush.msra.mxu0 0.0
    %v447 = vand.u32 %v389, 4294901760
    %v448 = vsub.f32 %v389, %v447
    %v449 = vand.u32 %v448, 4294901760
    %v450 = vsub.f32 %v448, %v449
    %v451 = vand.u32 %v450, 4294901760
    %452 = vmatpush.msra.mxu0 %v451
    %v453 = vand.u32 %v393, 4294901760
    %454 = vmatmul.f32.gmra.mxu0 %v453
    %v455 = vpop.f32.mrf.mxu0
    %v456 = vadd.f32 %v422, %v455
    %v457 = vand.u32 %v396, 4294901760
    %458 = vmatmul.f32.gmra.mxu0 %v457
    %v459 = vpop.f32.mrf.mxu0
    %v460 = vadd.f32 %v430, %v459
    %461 = vdwg.mxu0
    %462 = vmatpush.msra.mxu0 0.0
    %463 = vmatpush.msra.mxu0 0.0
    %464 = vmatpush.msra.mxu0 0.0
    %465 = vmatpush.msra.mxu0 0.0
    %466 = vmatpush.msra.mxu0 0.0
    %467 = vmatpush.msra.mxu0 0.0
    %468 = vmatpush.msra.mxu0 0.0
    %469 = vmatpush.msra.mxu0 0.0
    %470 = vmatpush.msra.mxu0 0.0
    %471 = vmatpush.msra.mxu0 0.0
    %472 = vmatpush.msra.mxu0 0.0
    %473 = vmatpush.msra.mxu0 0.0
    %474 = vmatpush.msra.mxu0 0.0
    %475 = vmatpush.msra.mxu0 0.0
    %476 = vmatpush.msra.mxu0 0.0
    %v477 = vand.u32 %v389, 4294901760
    %v478 = vsub.f32 %v389, %v477
    %479 = vmatpush.msra.mxu0 %v478
    %v480 = vand.u32 %v393, 4294901760
    %v481 = vsub.f32 %v393, %v480
    %482 = vmatmul.f32.gmra.mxu0 %v481
    %v483 = vpop.f32.mrf.mxu0
    %v484 = vadd.f32 %v456, %v483
    %v485 = vand.u32 %v396, 4294901760
    %v486 = vsub.f32 %v396, %v485
    %487 = vmatmul.f32.gmra.mxu0 %v486
    %v488 = vpop.f32.mrf.mxu0
    %v489 = vadd.f32 %v460, %v488
    %490 = vdwg.mxu0
    %491 = vmatpush.msra.mxu0 0.0
    %492 = vmatpush.msra.mxu0 0.0
    %493 = vmatpush.msra.mxu0 0.0
    %494 = vmatpush.msra.mxu0 0.0
    %495 = vmatpush.msra.mxu0 0.0
    %496 = vmatpush.msra.mxu0 0.0
    %497 = vmatpush.msra.mxu0 0.0
    %498 = vmatpush.msra.mxu0 0.0
    %499 = vmatpush.msra.mxu0 0.0
    %500 = vmatpush.msra.mxu0 0.0
    %501 = vmatpush.msra.mxu0 0.0
    %502 = vmatpush.msra.mxu0 0.0
    %503 = vmatpush.msra.mxu0 0.0
    %504 = vmatpush.msra.mxu0 0.0
    %505 = vmatpush.msra.mxu0 0.0
    %v506 = vand.u32 %v389, 4294901760
    %507 = vmatpush.msra.mxu0 %v506
    %v508 = vand.u32 %v393, 4294901760
    %v509 = vsub.f32 %v393, %v508
    %v510 = vand.u32 %v509, 4294901760
    %511 = vmatmul.f32.gmra.mxu0 %v510
    %v512 = vpop.f32.mrf.mxu0
    %v513 = vadd.f32 %v484, %v512
    %v514 = vand.u32 %v396, 4294901760
    %v515 = vsub.f32 %v396, %v514
    %v516 = vand.u32 %v515, 4294901760
    %517 = vmatmul.f32.gmra.mxu0 %v516
    %v518 = vpop.f32.mrf.mxu0
    %v519 = vadd.f32 %v489, %v518
    %520 = vdwg.mxu0
    %521 = vmatpush.msra.mxu0 0.0
    %522 = vmatpush.msra.mxu0 0.0
    %523 = vmatpush.msra.mxu0 0.0
    %524 = vmatpush.msra.mxu0 0.0
    %525 = vmatpush.msra.mxu0 0.0
    %526 = vmatpush.msra.mxu0 0.0
    %527 = vmatpush.msra.mxu0 0.0
    %528 = vmatpush.msra.mxu0 0.0
    %529 = vmatpush.msra.mxu0 0.0
    %530 = vmatpush.msra.mxu0 0.0
    %531 = vmatpush.msra.mxu0 0.0
    %532 = vmatpush.msra.mxu0 0.0
    %533 = vmatpush.msra.mxu0 0.0
    %534 = vmatpush.msra.mxu0 0.0
    %535 = vmatpush.msra.mxu0 0.0
    %v536 = vand.u32 %v389, 4294901760
    %v537 = vsub.f32 %v389, %v536
    %v538 = vand.u32 %v537, 4294901760
    %539 = vmatpush.msra.mxu0 %v538
    %v540 = vand.u32 %v393, 4294901760
    %541 = vmatmul.f32.gmra.mxu0 %v540
    %v542 = vpop.f32.mrf.mxu0
    %v543 = vadd.f32 %v513, %v542
    %v544 = vand.u32 %v396, 4294901760
    %545 = vmatmul.f32.gmra.mxu0 %v544
    %v546 = vpop.f32.mrf.mxu0
    %v547 = vadd.f32 %v519, %v546
    %548 = vdwg.mxu0
    %549 = vmatpush.msra.mxu0 0.0
    %550 = vmatpush.msra.mxu0 0.0
    %551 = vmatpush.msra.mxu0 0.0
    %552 = vmatpush.msra.mxu0 0.0
    %553 = vmatpush.msra.mxu0 0.0
    %554 = vmatpush.msra.mxu0 0.0
    %555 = vmatpush.msra.mxu0 0.0
    %556 = vmatpush.msra.mxu0 0.0
    %557 = vmatpush.msra.mxu0 0.0
    %558 = vmatpush.msra.mxu0 0.0
    %559 = vmatpush.msra.mxu0 0.0
    %560 = vmatpush.msra.mxu0 0.0
    %561 = vmatpush.msra.mxu0 0.0
    %562 = vmatpush.msra.mxu0 0.0
    %563 = vmatpush.msra.mxu0 0.0
    %v564 = vand.u32 %v389, 4294901760
    %565 = vmatpush.msra.mxu0 %v564
    %v566 = vand.u32 %v393, 4294901760
    %567 = vmatmul.f32.gmra.mxu0 %v566
    %v568 = vpop.f32.mrf.mxu0
    %v569 = vadd.f32 %v543, %v568
    %v570 = vand.u32 %v396, 4294901760
    %571 = vmatmul.f32.gmra.mxu0 %v570
    %v572 = vpop.f32.mrf.mxu0
    %v573 = vadd.f32 %v547, %v572
    %574 = vdwg.mxu0
    %v575 = vperm.slane %v390, 0
    %v577 = vsel %vm309, %v387, 0
    %v580 = vsel %vm309, %v388, 0
    %582 = vmatpush.msra.mxu0 0.0
    %583 = vmatpush.msra.mxu0 0.0
    %584 = vmatpush.msra.mxu0 0.0
    %585 = vmatpush.msra.mxu0 0.0
    %586 = vmatpush.msra.mxu0 0.0
    %587 = vmatpush.msra.mxu0 0.0
    %588 = vmatpush.msra.mxu0 0.0
    %589 = vmatpush.msra.mxu0 0.0
    %590 = vmatpush.msra.mxu0 0.0
    %591 = vmatpush.msra.mxu0 0.0
    %592 = vmatpush.msra.mxu0 0.0
    %593 = vmatpush.msra.mxu0 0.0
    %594 = vmatpush.msra.mxu0 0.0
    %595 = vmatpush.msra.mxu0 0.0
    %v596 = vand.u32 %v573, 4294901760
    %597 = vmatpush.msra.mxu0 %v596
    %v598 = vand.u32 %v569, 4294901760
    %599 = vmatpush.msra.mxu0 %v598
    %v600 = vand.u32 %v577, 4294901760
    %v601 = vsub.f32 %v577, %v600
    %v602 = vand.u32 %v601, 4294901760
    %v603 = vsub.f32 %v601, %v602
    %v604 = vand.u32 %v603, 4294901760
    %605 = vmatmul.f32.gmra.mxu0 %v604
    %v606 = vpop.f32.mrf.mxu0
    %v607 = vadd.f32 %v575, %v606
    %v608 = vand.u32 %v580, 4294901760
    %v609 = vsub.f32 %v580, %v608
    %v610 = vand.u32 %v609, 4294901760
    %v611 = vsub.f32 %v609, %v610
    %v612 = vand.u32 %v611, 4294901760
    %613 = vmatmul.f32.gmra.mxu0 %v612
    %v614 = vpop.f32.mrf.mxu0
    %v615 = vadd.f32 %v575, %v614
    %616 = vdwg.mxu0
    %617 = vmatpush.msra.mxu0 0.0
    %618 = vmatpush.msra.mxu0 0.0
    %619 = vmatpush.msra.mxu0 0.0
    %620 = vmatpush.msra.mxu0 0.0
    %621 = vmatpush.msra.mxu0 0.0
    %622 = vmatpush.msra.mxu0 0.0
    %623 = vmatpush.msra.mxu0 0.0
    %624 = vmatpush.msra.mxu0 0.0
    %625 = vmatpush.msra.mxu0 0.0
    %626 = vmatpush.msra.mxu0 0.0
    %627 = vmatpush.msra.mxu0 0.0
    %628 = vmatpush.msra.mxu0 0.0
    %629 = vmatpush.msra.mxu0 0.0
    %630 = vmatpush.msra.mxu0 0.0
    %v631 = vand.u32 %v573, 4294901760
    %v632 = vsub.f32 %v573, %v631
    %v633 = vand.u32 %v632, 4294901760
    %v634 = vsub.f32 %v632, %v633
    %v635 = vand.u32 %v634, 4294901760
    %636 = vmatpush.msra.mxu0 %v635
    %v637 = vand.u32 %v569, 4294901760
    %v638 = vsub.f32 %v569, %v637
    %v639 = vand.u32 %v638, 4294901760
    %v640 = vsub.f32 %v638, %v639
    %v641 = vand.u32 %v640, 4294901760
    %642 = vmatpush.msra.mxu0 %v641
    %v643 = vand.u32 %v577, 4294901760
    %644 = vmatmul.f32.gmra.mxu0 %v643
    %v645 = vpop.f32.mrf.mxu0
    %v646 = vadd.f32 %v607, %v645
    %v647 = vand.u32 %v580, 4294901760
    %648 = vmatmul.f32.gmra.mxu0 %v647
    %v649 = vpop.f32.mrf.mxu0
    %v650 = vadd.f32 %v615, %v649
    %651 = vdwg.mxu0
    %652 = vmatpush.msra.mxu0 0.0
    %653 = vmatpush.msra.mxu0 0.0
    %654 = vmatpush.msra.mxu0 0.0
    %655 = vmatpush.msra.mxu0 0.0
    %656 = vmatpush.msra.mxu0 0.0
    %657 = vmatpush.msra.mxu0 0.0
    %658 = vmatpush.msra.mxu0 0.0
    %659 = vmatpush.msra.mxu0 0.0
    %660 = vmatpush.msra.mxu0 0.0
    %661 = vmatpush.msra.mxu0 0.0
    %662 = vmatpush.msra.mxu0 0.0
    %663 = vmatpush.msra.mxu0 0.0
    %664 = vmatpush.msra.mxu0 0.0
    %665 = vmatpush.msra.mxu0 0.0
    %v666 = vand.u32 %v573, 4294901760
    %v667 = vsub.f32 %v573, %v666
    %668 = vmatpush.msra.mxu0 %v667
    %v669 = vand.u32 %v569, 4294901760
    %v670 = vsub.f32 %v569, %v669
    %671 = vmatpush.msra.mxu0 %v670
    %v672 = vand.u32 %v577, 4294901760
    %v673 = vsub.f32 %v577, %v672
    %674 = vmatmul.f32.gmra.mxu0 %v673
    %v675 = vpop.f32.mrf.mxu0
    %v676 = vadd.f32 %v646, %v675
    %v677 = vand.u32 %v580, 4294901760
    %v678 = vsub.f32 %v580, %v677
    %679 = vmatmul.f32.gmra.mxu0 %v678
    %v680 = vpop.f32.mrf.mxu0
    %v681 = vadd.f32 %v650, %v680
    %682 = vdwg.mxu0
    %683 = vmatpush.msra.mxu0 0.0
    %684 = vmatpush.msra.mxu0 0.0
    %685 = vmatpush.msra.mxu0 0.0
    %686 = vmatpush.msra.mxu0 0.0
    %687 = vmatpush.msra.mxu0 0.0
    %688 = vmatpush.msra.mxu0 0.0
    %689 = vmatpush.msra.mxu0 0.0
    %690 = vmatpush.msra.mxu0 0.0
    %691 = vmatpush.msra.mxu0 0.0
    %692 = vmatpush.msra.mxu0 0.0
    %693 = vmatpush.msra.mxu0 0.0
    %694 = vmatpush.msra.mxu0 0.0
    %695 = vmatpush.msra.mxu0 0.0
    %696 = vmatpush.msra.mxu0 0.0
    %v697 = vand.u32 %v573, 4294901760
    %698 = vmatpush.msra.mxu0 %v697
    %v699 = vand.u32 %v569, 4294901760
    %700 = vmatpush.msra.mxu0 %v699
    %v701 = vand.u32 %v577, 4294901760
    %v702 = vsub.f32 %v577, %v701
    %v703 = vand.u32 %v702, 4294901760
    %704 = vmatmul.f32.gmra.mxu0 %v703
    %v705 = vpop.f32.mrf.mxu0
    %v706 = vadd.f32 %v676, %v705
    %v707 = vand.u32 %v580, 4294901760
    %v708 = vsub.f32 %v580, %v707
    %v709 = vand.u32 %v708, 4294901760
    %710 = vmatmul.f32.gmra.mxu0 %v709
    %v711 = vpop.f32.mrf.mxu0
    %v712 = vadd.f32 %v681, %v711
    %713 = vdwg.mxu0
    %714 = vmatpush.msra.mxu0 0.0
    %715 = vmatpush.msra.mxu0 0.0
    %716 = vmatpush.msra.mxu0 0.0
    %717 = vmatpush.msra.mxu0 0.0
    %718 = vmatpush.msra.mxu0 0.0
    %719 = vmatpush.msra.mxu0 0.0
    %720 = vmatpush.msra.mxu0 0.0
    %721 = vmatpush.msra.mxu0 0.0
    %722 = vmatpush.msra.mxu0 0.0
    %723 = vmatpush.msra.mxu0 0.0
    %724 = vmatpush.msra.mxu0 0.0
    %725 = vmatpush.msra.mxu0 0.0
    %726 = vmatpush.msra.mxu0 0.0
    %727 = vmatpush.msra.mxu0 0.0
    %v728 = vand.u32 %v573, 4294901760
    %v729 = vsub.f32 %v573, %v728
    %v730 = vand.u32 %v729, 4294901760
    %731 = vmatpush.msra.mxu0 %v730
    %v732 = vand.u32 %v569, 4294901760
    %v733 = vsub.f32 %v569, %v732
    %v734 = vand.u32 %v733, 4294901760
    %735 = vmatpush.msra.mxu0 %v734
    %v736 = vand.u32 %v577, 4294901760
    %737 = vmatmul.f32.gmra.mxu0 %v736
    %v738 = vpop.f32.mrf.mxu0
    %v739 = vadd.f32 %v706, %v738
    %v740 = vand.u32 %v580, 4294901760
    %741 = vmatmul.f32.gmra.mxu0 %v740
    %v742 = vpop.f32.mrf.mxu0
    %v743 = vadd.f32 %v712, %v742
    %744 = vdwg.mxu0
    %745 = vmatpush.msra.mxu0 0.0
    %746 = vmatpush.msra.mxu0 0.0
    %747 = vmatpush.msra.mxu0 0.0
    %748 = vmatpush.msra.mxu0 0.0
    %749 = vmatpush.msra.mxu0 0.0
    %750 = vmatpush.msra.mxu0 0.0
    %751 = vmatpush.msra.mxu0 0.0
    %752 = vmatpush.msra.mxu0 0.0
    %753 = vmatpush.msra.mxu0 0.0
    %754 = vmatpush.msra.mxu0 0.0
    %755 = vmatpush.msra.mxu0 0.0
    %756 = vmatpush.msra.mxu0 0.0
    %757 = vmatpush.msra.mxu0 0.0
    %758 = vmatpush.msra.mxu0 0.0
    %v759 = vand.u32 %v573, 4294901760
    %760 = vmatpush.msra.mxu0 %v759
    %v761 = vand.u32 %v569, 4294901760
    %762 = vmatpush.msra.mxu0 %v761
    %v763 = vand.u32 %v577, 4294901760
    %764 = vmatmul.f32.gmra.mxu0 %v763
    %v765 = vpop.f32.mrf.mxu0
    %v766 = vadd.f32 %v739, %v765
    %v767 = vand.u32 %v580, 4294901760
    %768 = vmatmul.f32.gmra.mxu0 %v767
    %v769 = vpop.f32.mrf.mxu0
    %v770 = vadd.f32 %v743, %v769
    %771 = vdwg.mxu0
    %v772 = vmax.f32 %v766, 0.0
    %v773 = vmax.f32 %v770, 0.0
    %v774 = vld [vmem:[#allocation2 + $0x8] sm:$0xff]
    %v775 = vld [vmem:[#allocation2 + $0x10] sm:$0xff]
    %v776 = vld [vmem:[#allocation2 + $0x18] sm:$0xff]
    %v777 = vld [vmem:[#allocation2 + $0x20] sm:$0xff]
    %v778 = vld [vmem:[#allocation2 + $0xa9] sm:$0x1]
    %v780 = vsel %vm86, %v772, 0
    %v783 = vsel %vm86, %v773, 0
    %785 = vmatpush.msra.mxu0 0.0
    %786 = vmatpush.msra.mxu0 0.0
    %787 = vmatpush.msra.mxu0 0.0
    %788 = vmatpush.msra.mxu0 0.0
    %789 = vmatpush.msra.mxu0 0.0
    %790 = vmatpush.msra.mxu0 0.0
    %791 = vmatpush.msra.mxu0 0.0
    %792 = vmatpush.msra.mxu0 0.0
    %793 = vmatpush.msra.mxu0 0.0
    %794 = vmatpush.msra.mxu0 0.0
    %795 = vmatpush.msra.mxu0 0.0
    %796 = vmatpush.msra.mxu0 0.0
    %v797 = vand.u32 %v777, 4294901760
    %798 = vmatpush.msra.mxu0 %v797
    %v799 = vand.u32 %v776, 4294901760
    %800 = vmatpush.msra.mxu0 %v799
    %v801 = vand.u32 %v775, 4294901760
    %802 = vmatpush.msra.mxu0 %v801
    %v803 = vand.u32 %v774, 4294901760
    %804 = vmatpush.msra.mxu0 %v803
    %v805 = vand.u32 %v780, 4294901760
    %v806 = vsub.f32 %v780, %v805
    %v807 = vand.u32 %v806, 4294901760
    %v808 = vsub.f32 %v806, %v807
    %v809 = vand.u32 %v808, 4294901760
    %810 = vmatmul.f32.gmra.mxu0 %v809
    %v811 = vpop.f32.mrf.mxu0
    %v812 = vadd.f32 0.0, %v811
    %v813 = vand.u32 %v783, 4294901760
    %v814 = vsub.f32 %v783, %v813
    %v815 = vand.u32 %v814, 4294901760
    %v816 = vsub.f32 %v814, %v815
    %v817 = vand.u32 %v816, 4294901760
    %818 = vmatmul.f32.gmra.mxu0 %v817
    %v819 = vpop.f32.mrf.mxu0
    %v820 = vadd.f32 0.0, %v819
    %821 = vdwg.mxu0
    %822 = vmatpush.msra.mxu0 0.0
    %823 = vmatpush.msra.mxu0 0.0
    %824 = vmatpush.msra.mxu0 0.0
    %825 = vmatpush.msra.mxu0 0.0
    %826 = vmatpush.msra.mxu0 0.0
    %827 = vmatpush.msra.mxu0 0.0
    %828 = vmatpush.msra.mxu0 0.0
    %829 = vmatpush.msra.mxu0 0.0
    %830 = vmatpush.msra.mxu0 0.0
    %831 = vmatpush.msra.mxu0 0.0
    %832 = vmatpush.msra.mxu0 0.0
    %833 = vmatpush.msra.mxu0 0.0
    %v834 = vand.u32 %v777, 4294901760
    %v835 = vsub.f32 %v777, %v834
    %v836 = vand.u32 %v835, 4294901760
    %v837 = vsub.f32 %v835, %v836
    %v838 = vand.u32 %v837, 4294901760
    %839 = vmatpush.msra.mxu0 %v838
    %v840 = vand.u32 %v776, 4294901760
    %v841 = vsub.f32 %v776, %v840
    %v842 = vand.u32 %v841, 4294901760
    %v843 = vsub.f32 %v841, %v842
    %v844 = vand.u32 %v843, 4294901760
    %845 = vmatpush.msra.mxu0 %v844
    %v846 = vand.u32 %v775, 4294901760
    %v847 = vsub.f32 %v775, %v846
    %v848 = vand.u32 %v847, 4294901760
    %v849 = vsub.f32 %v847, %v848
    %v850 = vand.u32 %v849, 4294901760
    %851 = vmatpush.msra.mxu0 %v850
    %v852 = vand.u32 %v774, 4294901760
    %v853 = vsub.f32 %v774, %v852
    %v854 = vand.u32 %v853, 4294901760
    %v855 = vsub.f32 %v853, %v854
    %v856 = vand.u32 %v855, 4294901760
    %857 = vmatpush.msra.mxu0 %v856
    %v858 = vand.u32 %v780, 4294901760
    %859 = vmatmul.f32.gmra.mxu0 %v858
    %v860 = vpop.f32.mrf.mxu0
    %v861 = vadd.f32 %v812, %v860
    %v862 = vand.u32 %v783, 4294901760
    %863 = vmatmul.f32.gmra.mxu0 %v862
    %v864 = vpop.f32.mrf.mxu0
    %v865 = vadd.f32 %v820, %v864
    %866 = vdwg.mxu0
    %867 = vmatpush.msra.mxu0 0.0
    %868 = vmatpush.msra.mxu0 0.0
    %869 = vmatpush.msra.mxu0 0.0
    %870 = vmatpush.msra.mxu0 0.0
    %871 = vmatpush.msra.mxu0 0.0
    %872 = vmatpush.msra.mxu0 0.0
    %873 = vmatpush.msra.mxu0 0.0
    %874 = vmatpush.msra.mxu0 0.0
    %875 = vmatpush.msra.mxu0 0.0
    %876 = vmatpush.msra.mxu0 0.0
    %877 = vmatpush.msra.mxu0 0.0
    %878 = vmatpush.msra.mxu0 0.0
    %v879 = vand.u32 %v777, 4294901760
    %v880 = vsub.f32 %v777, %v879
    %881 = vmatpush.msra.mxu0 %v880
    %v882 = vand.u32 %v776, 4294901760
    %v883 = vsub.f32 %v776, %v882
    %884 = vmatpush.msra.mxu0 %v883
    %v885 = vand.u32 %v775, 4294901760
    %v886 = vsub.f32 %v775, %v885
    %887 = vmatpush.msra.mxu0 %v886
    %v888 = vand.u32 %v774, 4294901760
    %v889 = vsub.f32 %v774, %v888
    %890 = vmatpush.msra.mxu0 %v889
    %v891 = vand.u32 %v780, 4294901760
    %v892 = vsub.f32 %v780, %v891
    %893 = vmatmul.f32.gmra.mxu0 %v892
    %v894 = vpop.f32.mrf.mxu0
    %v895 = vadd.f32 %v861, %v894
    %v896 = vand.u32 %v783, 4294901760
    %v897 = vsub.f32 %v783, %v896
    %898 = vmatmul.f32.gmra.mxu0 %v897
    %v899 = vpop.f32.mrf.mxu0
    %v900 = vadd.f32 %v865, %v899
    %901 = vdwg.mxu0
    %902 = vmatpush.msra.mxu0 0.0
    %903 = vmatpush.msra.mxu0 0.0
    %904 = vmatpush.msra.mxu0 0.0
    %905 = vmatpush.msra.mxu0 0.0
    %906 = vmatpush.msra.mxu0 0.0
    %907 = vmatpush.msra.mxu0 0.0
    %908 = vmatpush.msra.mxu0 0.0
    %909 = vmatpush.msra.mxu0 0.0
    %910 = vmatpush.msra.mxu0 0.0
    %911 = vmatpush.msra.mxu0 0.0
    %912 = vmatpush.msra.mxu0 0.0
    %913 = vmatpush.msra.mxu0 0.0
    %v914 = vand.u32 %v777, 4294901760
    %915 = vmatpush.msra.mxu0 %v914
    %v916 = vand.u32 %v776, 4294901760
    %917 = vmatpush.msra.mxu0 %v916
    %v918 = vand.u32 %v775, 4294901760
    %919 = vmatpush.msra.mxu0 %v918
    %v920 = vand.u32 %v774, 4294901760
    %921 = vmatpush.msra.mxu0 %v920
    %v922 = vand.u32 %v780, 4294901760
    %v923 = vsub.f32 %v780, %v922
    %v924 = vand.u32 %v923, 4294901760
    %925 = vmatmul.f32.gmra.mxu0 %v924
    %v926 = vpop.f32.mrf.mxu0
    %v927 = vadd.f32 %v895, %v926
    %v928 = vand.u32 %v783, 4294901760
    %v929 = vsub.f32 %v783, %v928
    %v930 = vand.u32 %v929, 4294901760
    %931 = vmatmul.f32.gmra.mxu0 %v930
    %v932 = vpop.f32.mrf.mxu0
    %v933 = vadd.f32 %v900, %v932
    %934 = vdwg.mxu0
    %935 = vmatpush.msra.mxu0 0.0
    %936 = vmatpush.msra.mxu0 0.0
    %937 = vmatpush.msra.mxu0 0.0
    %938 = vmatpush.msra.mxu0 0.0
    %939 = vmatpush.msra.mxu0 0.0
    %940 = vmatpush.msra.mxu0 0.0
    %941 = vmatpush.msra.mxu0 0.0
    %942 = vmatpush.msra.mxu0 0.0
    %943 = vmatpush.msra.mxu0 0.0
    %944 = vmatpush.msra.mxu0 0.0
    %945 = vmatpush.msra.mxu0 0.0
    %946 = vmatpush.msra.mxu0 0.0
    %v947 = vand.u32 %v777, 4294901760
    %v948 = vsub.f32 %v777, %v947
    %v949 = vand.u32 %v948, 4294901760
    %950 = vmatpush.msra.mxu0 %v949
    %v951 = vand.u32 %v776, 4294901760
    %v952 = vsub.f32 %v776, %v951
    %v953 = vand.u32 %v952, 4294901760
    %954 = vmatpush.msra.mxu0 %v953
    %v955 = vand.u32 %v775, 4294901760
    %v956 = vsub.f32 %v775, %v955
    %v957 = vand.u32 %v956, 4294901760
    %958 = vmatpush.msra.mxu0 %v957
    %v959 = vand.u32 %v774, 4294901760
    %v960 = vsub.f32 %v774, %v959
    %v961 = vand.u32 %v960, 4294901760
    %962 = vmatpush.msra.mxu0 %v961
    %v963 = vand.u32 %v780, 4294901760
    %964 = vmatmul.f32.gmra.mxu0 %v963
    %v965 = vpop.f32.mrf.mxu0
    %v966 = vadd.f32 %v927, %v965
    %v967 = vand.u32 %v783, 4294901760
    %968 = vmatmul.f32.gmra.mxu0 %v967
    %v969 = vpop.f32.mrf.mxu0
    %v970 = vadd.f32 %v933, %v969
    %971 = vdwg.mxu0
    %972 = vmatpush.msra.mxu0 0.0
    %973 = vmatpush.msra.mxu0 0.0
    %974 = vmatpush.msra.mxu0 0.0
    %975 = vmatpush.msra.mxu0 0.0
    %976 = vmatpush.msra.mxu0 0.0
    %977 = vmatpush.msra.mxu0 0.0
    %978 = vmatpush.msra.mxu0 0.0
    %979 = vmatpush.msra.mxu0 0.0
    %980 = vmatpush.msra.mxu0 0.0
    %981 = vmatpush.msra.mxu0 0.0
    %982 = vmatpush.msra.mxu0 0.0
    %983 = vmatpush.msra.mxu0 0.0
    %v984 = vand.u32 %v777, 4294901760
    %985 = vmatpush.msra.mxu0 %v984
    %v986 = vand.u32 %v776, 4294901760
    %987 = vmatpush.msra.mxu0 %v986
    %v988 = vand.u32 %v775, 4294901760
    %989 = vmatpush.msra.mxu0 %v988
    %v990 = vand.u32 %v774, 4294901760
    %991 = vmatpush.msra.mxu0 %v990
    %v992 = vand.u32 %v780, 4294901760
    %993 = vmatmul.f32.gmra.mxu0 %v992
    %v994 = vpop.f32.mrf.mxu0
    %v995 = vadd.f32 %v966, %v994
    %v996 = vand.u32 %v783, 4294901760
    %997 = vmatmul.f32.gmra.mxu0 %v996
    %v998 = vpop.f32.mrf.mxu0
    %v999 = vadd.f32 %v970, %v998
    %1000 = vdwg.mxu0
    %v1001 = vperm.slane %v778, 0
    %1002 = vmatpush.msra.mxu0 0.0
    %1003 = vmatpush.msra.mxu0 0.0
    %1004 = vmatpush.msra.mxu0 0.0
    %1005 = vmatpush.msra.mxu0 0.0
    %1006 = vmatpush.msra.mxu0 0.0
    %1007 = vmatpush.msra.mxu0 0.0
    %1008 = vmatpush.msra.mxu0 0.0
    %1009 = vmatpush.msra.mxu0 0.0
    %1010 = vmatpush.msra.mxu0 0.0
    %1011 = vmatpush.msra.mxu0 0.0
    %1012 = vmatpush.msra.mxu0 0.0
    %1013 = vmatpush.msra.mxu0 0.0
    %1014 = vmatpush.msra.mxu0 0.0
    %1015 = vmatpush.msra.mxu0 0.0
    %v1016 = vand.u32 %v999, 4294901760
    %1017 = vmatpush.msra.mxu0 %v1016
    %v1018 = vand.u32 %v995, 4294901760
    %1019 = vmatpush.msra.mxu0 %v1018
    %v1020 = vand.u32 %v577, 4294901760
    %v1021 = vsub.f32 %v577, %v1020
    %v1022 = vand.u32 %v1021, 4294901760
    %v1023 = vsub.f32 %v1021, %v1022
    %v1024 = vand.u32 %v1023, 4294901760
    %1025 = vmatmul.f32.gmra.mxu0 %v1024
    %v1026 = vpop.f32.mrf.mxu0
    %v1027 = vadd.f32 %v1001, %v1026
    %v1028 = vand.u32 %v580, 4294901760
    %v1029 = vsub.f32 %v580, %v1028
    %v1030 = vand.u32 %v1029, 4294901760
    %v1031 = vsub.f32 %v1029, %v1030
    %v1032 = vand.u32 %v1031, 4294901760
    %1033 = vmatmul.f32.gmra.mxu0 %v1032
    %v1034 = vpop.f32.mrf.mxu0
    %v1035 = vadd.f32 %v1001, %v1034
    %1036 = vdwg.mxu0
    %1037 = vmatpush.msra.mxu0 0.0
    %1038 = vmatpush.msra.mxu0 0.0
    %1039 = vmatpush.msra.mxu0 0.0
    %1040 = vmatpush.msra.mxu0 0.0
    %1041 = vmatpush.msra.mxu0 0.0
    %1042 = vmatpush.msra.mxu0 0.0
    %1043 = vmatpush.msra.mxu0 0.0
    %1044 = vmatpush.msra.mxu0 0.0
    %1045 = vmatpush.msra.mxu0 0.0
    %1046 = vmatpush.msra.mxu0 0.0
    %1047 = vmatpush.msra.mxu0 0.0
    %1048 = vmatpush.msra.mxu0 0.0
    %1049 = vmatpush.msra.mxu0 0.0
    %1050 = vmatpush.msra.mxu0 0.0
    %v1051 = vand.u32 %v999, 4294901760
    %v1052 = vsub.f32 %v999, %v1051
    %v1053 = vand.u32 %v1052, 4294901760
    %v1054 = vsub.f32 %v1052, %v1053
    %v1055 = vand.u32 %v1054, 4294901760
    %1056 = vmatpush.msra.mxu0 %v1055
    %v1057 = vand.u32 %v995, 4294901760
    %v1058 = vsub.f32 %v995, %v1057
    %v1059 = vand.u32 %v1058, 4294901760
    %v1060 = vsub.f32 %v1058, %v1059
    %v1061 = vand.u32 %v1060, 4294901760
    %1062 = vmatpush.msra.mxu0 %v1061
    %v1063 = vand.u32 %v577, 4294901760
    %1064 = vmatmul.f32.gmra.mxu0 %v1063
    %v1065 = vpop.f32.mrf.mxu0
    %v1066 = vadd.f32 %v1027, %v1065
    %v1067 = vand.u32 %v580, 4294901760
    %1068 = vmatmul.f32.gmra.mxu0 %v1067
    %v1069 = vpop.f32.mrf.mxu0
    %v1070 = vadd.f32 %v1035, %v1069
    %1071 = vdwg.mxu0
    %1072 = vmatpush.msra.mxu0 0.0
    %1073 = vmatpush.msra.mxu0 0.0
    %1074 = vmatpush.msra.mxu0 0.0
    %1075 = vmatpush.msra.mxu0 0.0
    %1076 = vmatpush.msra.mxu0 0.0
    %1077 = vmatpush.msra.mxu0 0.0
    %1078 = vmatpush.msra.mxu0 0.0
    %1079 = vmatpush.msra.mxu0 0.0
    %1080 = vmatpush.msra.mxu0 0.0
    %1081 = vmatpush.msra.mxu0 0.0
    %1082 = vmatpush.msra.mxu0 0.0
    %1083 = vmatpush.msra.mxu0 0.0
    %1084 = vmatpush.msra.mxu0 0.0
    %1085 = vmatpush.msra.mxu0 0.0
    %v1086 = vand.u32 %v999, 4294901760
    %v1087 = vsub.f32 %v999, %v1086
    %1088 = vmatpush.msra.mxu0 %v1087
    %v1089 = vand.u32 %v995, 4294901760
    %v1090 = vsub.f32 %v995, %v1089
    %1091 = vmatpush.msra.mxu0 %v1090
    %v1092 = vand.u32 %v577, 4294901760
    %v1093 = vsub.f32 %v577, %v1092
    %1094 = vmatmul.f32.gmra.mxu0 %v1093
    %v1095 = vpop.f32.mrf.mxu0
    %v1096 = vadd.f32 %v1066, %v1095
    %v1097 = vand.u32 %v580, 4294901760
    %v1098 = vsub.f32 %v580, %v1097
    %1099 = vmatmul.f32.gmra.mxu0 %v1098
    %v1100 = vpop.f32.mrf.mxu0
    %v1101 = vadd.f32 %v1070, %v1100
    %1102 = vdwg.mxu0
    %1103 = vmatpush.msra.mxu0 0.0
    %1104 = vmatpush.msra.mxu0 0.0
    %1105 = vmatpush.msra.mxu0 0.0
    %1106 = vmatpush.msra.mxu0 0.0
    %1107 = vmatpush.msra.mxu0 0.0
    %1108 = vmatpush.msra.mxu0 0.0
    %1109 = vmatpush.msra.mxu0 0.0
    %1110 = vmatpush.msra.mxu0 0.0
    %1111 = vmatpush.msra.mxu0 0.0
    %1112 = vmatpush.msra.mxu0 0.0
    %1113 = vmatpush.msra.mxu0 0.0
    %1114 = vmatpush.msra.mxu0 0.0
    %1115 = vmatpush.msra.mxu0 0.0
    %1116 = vmatpush.msra.mxu0 0.0
    %v1117 = vand.u32 %v999, 4294901760
    %1118 = vmatpush.msra.mxu0 %v1117
    %v1119 = vand.u32 %v995, 4294901760
    %1120 = vmatpush.msra.mxu0 %v1119
    %v1121 = vand.u32 %v577, 4294901760
    %v1122 = vsub.f32 %v577, %v1121
    %v1123 = vand.u32 %v1122, 4294901760
    %1124 = vmatmul.f32.gmra.mxu0 %v1123
    %v1125 = vpop.f32.mrf.mxu0
    %v1126 = vadd.f32 %v1096, %v1125
    %v1127 = vand.u32 %v580, 4294901760
    %v1128 = vsub.f32 %v580, %v1127
    %v1129 = vand.u32 %v1128, 4294901760
    %1130 = vmatmul.f32.gmra.mxu0 %v1129
    %v1131 = vpop.f32.mrf.mxu0
    %v1132 = vadd.f32 %v1101, %v1131
    %1133 = vdwg.mxu0
    %1134 = vmatpush.msra.mxu0 0.0
    %1135 = vmatpush.msra.mxu0 0.0
    %1136 = vmatpush.msra.mxu0 0.0
    %1137 = vmatpush.msra.mxu0 0.0
    %1138 = vmatpush.msra.mxu0 0.0
    %1139 = vmatpush.msra.mxu0 0.0
    %1140 = vmatpush.msra.mxu0 0.0
    %1141 = vmatpush.msra.mxu0 0.0
    %1142 = vmatpush.msra.mxu0 0.0
    %1143 = vmatpush.msra.mxu0 0.0
    %1144 = vmatpush.msra.mxu0 0.0
    %1145 = vmatpush.msra.mxu0 0.0
    %1146 = vmatpush.msra.mxu0 0.0
    %1147 = vmatpush.msra.mxu0 0.0
    %v1148 = vand.u32 %v999, 4294901760
    %v1149 = vsub.f32 %v999, %v1148
    %v1150 = vand.u32 %v1149, 4294901760
    %1151 = vmatpush.msra.mxu0 %v1150
    %v1152 = vand.u32 %v995, 4294901760
    %v1153 = vsub.f32 %v995, %v1152
    %v1154 = vand.u32 %v1153, 4294901760
    %1155 = vmatpush.msra.mxu0 %v1154
    %v1156 = vand.u32 %v577, 4294901760
    %1157 = vmatmul.f32.gmra.mxu0 %v1156
    %v1158 = vpop.f32.mrf.mxu0
    %v1159 = vadd.f32 %v1126, %v1158
    %v1160 = vand.u32 %v580, 4294901760
    %1161 = vmatmul.f32.gmra.mxu0 %v1160
    %v1162 = vpop.f32.mrf.mxu0
    %v1163 = vadd.f32 %v1132, %v1162
    %1164 = vdwg.mxu0
    %1165 = vmatpush.msra.mxu0 0.0
    %1166 = vmatpush.msra.mxu0 0.0
    %1167 = vmatpush.msra.mxu0 0.0
    %1168 = vmatpush.msra.mxu0 0.0
    %1169 = vmatpush.msra.mxu0 0.0
    %1170 = vmatpush.msra.mxu0 0.0
    %1171 = vmatpush.msra.mxu0 0.0
    %1172 = vmatpush.msra.mxu0 0.0
    %1173 = vmatpush.msra.mxu0 0.0
    %1174 = vmatpush.msra.mxu0 0.0
    %1175 = vmatpush.msra.mxu0 0.0
    %1176 = vmatpush.msra.mxu0 0.0
    %1177 = vmatpush.msra.mxu0 0.0
    %1178 = vmatpush.msra.mxu0 0.0
    %v1179 = vand.u32 %v999, 4294901760
    %1180 = vmatpush.msra.mxu0 %v1179
    %v1181 = vand.u32 %v995, 4294901760
    %1182 = vmatpush.msra.mxu0 %v1181
    %v1183 = vand.u32 %v577, 4294901760
    %1184 = vmatmul.f32.gmra.mxu0 %v1183
    %v1185 = vpop.f32.mrf.mxu0
    %v1186 = vadd.f32 %v1159, %v1185
    %v1187 = vand.u32 %v580, 4294901760
    %1188 = vmatmul.f32.gmra.mxu0 %v1187
    %v1189 = vpop.f32.mrf.mxu0
    %v1190 = vadd.f32 %v1163, %v1189
    %1191 = vdwg.mxu0
    %v1192 = vmax.f32 %v1186, 0.0
    %v1193 = vmax.f32 %v1190, 0.0
    %v1194 = vperm.slane %v32, 0
    %vm1195 = vcmp.eq.s32.totalorder %v42, %v1194
    %v1196 = vsel %vm1195, 1, 0
    %v1197 = vcvt.s32.f32 %v1196
    %vm1198 = vcmask 123904
    %v1199 = vsel %vm1198, %v1197, 0.0
    %1200 = vadd.xlane.f32.xlu0 %v1199
    %v1201 = vpop.xlane.xlu0 %1200
    %vm1202 = vcmp.gt.f32.partialorder %v1201, 0.0
    %v1203 = vrcp.pop %v1201
    %v1204 = vmul.f32 %v1201, %v1203
    %v1205 = vsub.f32 1.0, %v1204
    %v1206 = vmul.f32 %v1203, %v1205
    %v1207 = vadd.f32 %v1203, %v1206
    %vm1208 = vweird.f32 %v1201
    %vm1209 = vweird.f32 %v1203
    %vm1210 = vmor %vm1208, %vm1209
    %v1211 = vsel %vm1210, %v1203, %v1207
    %v1212 = vand.u32 2147483647, %v1201
    %vm1213 = vcmp.eq.f32.partialorder %v1212, 8.507059e+37
    %v1214 = vand.u32 %v1201, 2147483648
    %v1215 = vor.u32 1.1754944e-38, %v1214
    %v1216 = vsel %vm1213, %v1215, %v1211
    %v1217 = vmul.f32 1.0, %v1216
    %v1218 = vsel %vm1202, %v1217, 0.0
    %v1219 = vmul.f32 %v1197, %v1218
    %v1221 = vsel %vm309, %v1219, 0
    %1223 = vmatpush.msra.mxu0 0.0
    %1224 = vmatpush.msra.mxu0 0.0
    %1225 = vmatpush.msra.mxu0 0.0
    %1226 = vmatpush.msra.mxu0 0.0
    %1227 = vmatpush.msra.mxu0 0.0
    %1228 = vmatpush.msra.mxu0 0.0
    %1229 = vmatpush.msra.mxu0 0.0
    %1230 = vmatpush.msra.mxu0 0.0
    %1231 = vmatpush.msra.mxu0 0.0
    %1232 = vmatpush.msra.mxu0 0.0
    %1233 = vmatpush.msra.mxu0 0.0
    %1234 = vmatpush.msra.mxu0 0.0
    %1235 = vmatpush.msra.mxu0 0.0
    %1236 = vmatpush.msra.mxu0 0.0
    %v1237 = vand.u32 %v1193, 4294901760
    %1238 = vmatpush.msra.mxu0 %v1237
    %v1239 = vand.u32 %v1192, 4294901760
    %1240 = vmatpush.msra.mxu0 %v1239
    %v1241 = vand.u32 %v1221, 4294901760
    %v1242 = vsub.f32 %v1221, %v1241
    %v1243 = vand.u32 %v1242, 4294901760
    %v1244 = vsub.f32 %v1242, %v1243
    %v1245 = vand.u32 %v1244, 4294901760
    %1246 = vmatmul.f32.gmra.mxu0 %v1245
    %v1247 = vpop.f32.mrf.mxu0
    %v1248 = vadd.f32 0.0, %v1247
    %1249 = vdwg.mxu0
    %1250 = vmatpush.msra.mxu0 0.0
    %1251 = vmatpush.msra.mxu0 0.0
    %1252 = vmatpush.msra.mxu0 0.0
    %1253 = vmatpush.msra.mxu0 0.0
    %1254 = vmatpush.msra.mxu0 0.0
    %1255 = vmatpush.msra.mxu0 0.0
    %1256 = vmatpush.msra.mxu0 0.0
    %1257 = vmatpush.msra.mxu0 0.0
    %1258 = vmatpush.msra.mxu0 0.0
    %1259 = vmatpush.msra.mxu0 0.0
    %1260 = vmatpush.msra.mxu0 0.0
    %1261 = vmatpush.msra.mxu0 0.0
    %1262 = vmatpush.msra.mxu0 0.0
    %1263 = vmatpush.msra.mxu0 0.0
    %v1264 = vand.u32 %v1193, 4294901760
    %v1265 = vsub.f32 %v1193, %v1264
    %v1266 = vand.u32 %v1265, 4294901760
    %v1267 = vsub.f32 %v1265, %v1266
    %v1268 = vand.u32 %v1267, 4294901760
    %1269 = vmatpush.msra.mxu0 %v1268
    %v1270 = vand.u32 %v1192, 4294901760
    %v1271 = vsub.f32 %v1192, %v1270
    %v1272 = vand.u32 %v1271, 4294901760
    %v1273 = vsub.f32 %v1271, %v1272
    %v1274 = vand.u32 %v1273, 4294901760
    %1275 = vmatpush.msra.mxu0 %v1274
    %v1276 = vand.u32 %v1221, 4294901760
    %1277 = vmatmul.f32.gmra.mxu0 %v1276
    %v1278 = vpop.f32.mrf.mxu0
    %v1279 = vadd.f32 %v1248, %v1278
    %1280 = vdwg.mxu0
    %1281 = vmatpush.msra.mxu0 0.0
    %1282 = vmatpush.msra.mxu0 0.0
    %1283 = vmatpush.msra.mxu0 0.0
    %1284 = vmatpush.msra.mxu0 0.0
    %1285 = vmatpush.msra.mxu0 0.0
    %1286 = vmatpush.msra.mxu0 0.0
    %1287 = vmatpush.msra.mxu0 0.0
    %1288 = vmatpush.msra.mxu0 0.0
    %1289 = vmatpush.msra.mxu0 0.0
    %1290 = vmatpush.msra.mxu0 0.0
    %1291 = vmatpush.msra.mxu0 0.0
    %1292 = vmatpush.msra.mxu0 0.0
    %1293 = vmatpush.msra.mxu0 0.0
    %1294 = vmatpush.msra.mxu0 0.0
    %v1295 = vand.u32 %v1193, 4294901760
    %v1296 = vsub.f32 %v1193, %v1295
    %1297 = vmatpush.msra.mxu0 %v1296
    %v1298 = vand.u32 %v1192, 4294901760
    %v1299 = vsub.f32 %v1192, %v1298
    %1300 = vmatpush.msra.mxu0 %v1299
    %v1301 = vand.u32 %v1221, 4294901760
    %v1302 = vsub.f32 %v1221, %v1301
    %1303 = vmatmul.f32.gmra.mxu0 %v1302
    %v1304 = vpop.f32.mrf.mxu0
    %v1305 = vadd.f32 %v1279, %v1304
    %1306 = vdwg.mxu0
    %1307 = vmatpush.msra.mxu0 0.0
    %1308 = vmatpush.msra.mxu0 0.0
    %1309 = vmatpush.msra.mxu0 0.0
    %1310 = vmatpush.msra.mxu0 0.0
    %1311 = vmatpush.msra.mxu0 0.0
    %1312 = vmatpush.msra.mxu0 0.0
    %1313 = vmatpush.msra.mxu0 0.0
    %1314 = vmatpush.msra.mxu0 0.0
    %1315 = vmatpush.msra.mxu0 0.0
    %1316 = vmatpush.msra.mxu0 0.0
    %1317 = vmatpush.msra.mxu0 0.0
    %1318 = vmatpush.msra.mxu0 0.0
    %1319 = vmatpush.msra.mxu0 0.0
    %1320 = vmatpush.msra.mxu0 0.0
    %v1321 = vand.u32 %v1193, 4294901760
    %1322 = vmatpush.msra.mxu0 %v1321
    %v1323 = vand.u32 %v1192, 4294901760
    %1324 = vmatpush.msra.mxu0 %v1323
    %v1325 = vand.u32 %v1221, 4294901760
    %v1326 = vsub.f32 %v1221, %v1325
    %v1327 = vand.u32 %v1326, 4294901760
    %1328 = vmatmul.f32.gmra.mxu0 %v1327
    %v1329 = vpop.f32.mrf.mxu0
    %v1330 = vadd.f32 %v1305, %v1329
    %1331 = vdwg.mxu0
    %1332 = vmatpush.msra.mxu0 0.0
    %1333 = vmatpush.msra.mxu0 0.0
    %1334 = vmatpush.msra.mxu0 0.0
    %1335 = vmatpush.msra.mxu0 0.0
    %1336 = vmatpush.msra.mxu0 0.0
    %1337 = vmatpush.msra.mxu0 0.0
    %1338 = vmatpush.msra.mxu0 0.0
    %1339 = vmatpush.msra.mxu0 0.0
    %1340 = vmatpush.msra.mxu0 0.0
    %1341 = vmatpush.msra.mxu0 0.0
    %1342 = vmatpush.msra.mxu0 0.0
    %1343 = vmatpush.msra.mxu0 0.0
    %1344 = vmatpush.msra.mxu0 0.0
    %1345 = vmatpush.msra.mxu0 0.0
    %v1346 = vand.u32 %v1193, 4294901760
    %v1347 = vsub.f32 %v1193, %v1346
    %v1348 = vand.u32 %v1347, 4294901760
    %1349 = vmatpush.msra.mxu0 %v1348
    %v1350 = vand.u32 %v1192, 4294901760
    %v1351 = vsub.f32 %v1192, %v1350
    %v1352 = vand.u32 %v1351, 4294901760
    %1353 = vmatpush.msra.mxu0 %v1352
    %v1354 = vand.u32 %v1221, 4294901760
    %1355 = vmatmul.f32.gmra.mxu0 %v1354
    %v1356 = vpop.f32.mrf.mxu0
    %v1357 = vadd.f32 %v1330, %v1356
    %1358 = vdwg.mxu0
    %1359 = vmatpush.msra.mxu0 0.0
    %1360 = vmatpush.msra.mxu0 0.0
    %1361 = vmatpush.msra.mxu0 0.0
    %1362 = vmatpush.msra.mxu0 0.0
    %1363 = vmatpush.msra.mxu0 0.0
    %1364 = vmatpush.msra.mxu0 0.0
    %1365 = vmatpush.msra.mxu0 0.0
    %1366 = vmatpush.msra.mxu0 0.0
    %1367 = vmatpush.msra.mxu0 0.0
    %1368 = vmatpush.msra.mxu0 0.0
    %1369 = vmatpush.msra.mxu0 0.0
    %1370 = vmatpush.msra.mxu0 0.0
    %1371 = vmatpush.msra.mxu0 0.0
    %1372 = vmatpush.msra.mxu0 0.0
    %v1373 = vand.u32 %v1193, 4294901760
    %1374 = vmatpush.msra.mxu0 %v1373
    %v1375 = vand.u32 %v1192, 4294901760
    %1376 = vmatpush.msra.mxu0 %v1375
    %v1377 = vand.u32 %v1221, 4294901760
    %1378 = vmatmul.f32.gmra.mxu0 %v1377
    %v1379 = vpop.f32.mrf.mxu0
    %v1380 = vadd.f32 %v1357, %v1379
    %1381 = vdwg.mxu0
    %v1382 = vld [vmem:[#allocation2 + $0x28] sm:$0xff]
    %v1383 = vld [vmem:[#allocation2 + $0x30] sm:$0xff]
    %v1384 = vld [vmem:[#allocation2 + $0x38] sm:$0xff]
    %v1385 = vld [vmem:[#allocation2 + $0x40] sm:$0xff]
    %v1386 = vld [vmem:[#allocation2 + $0xaa] sm:$0x1]
    %v1387 = vperm.slane %v1386, 0
    %v1389 = vsel %vm86, %v1380, 0
    %1391 = vmatpush.msra.mxu0 0.0
    %1392 = vmatpush.msra.mxu0 0.0
    %1393 = vmatpush.msra.mxu0 0.0
    %1394 = vmatpush.msra.mxu0 0.0
    %1395 = vmatpush.msra.mxu0 0.0
    %1396 = vmatpush.msra.mxu0 0.0
    %1397 = vmatpush.msra.mxu0 0.0
    %1398 = vmatpush.msra.mxu0 0.0
    %1399 = vmatpush.msra.mxu0 0.0
    %1400 = vmatpush.msra.mxu0 0.0
    %1401 = vmatpush.msra.mxu0 0.0
    %1402 = vmatpush.msra.mxu0 0.0
    %v1403 = vand.u32 %v1385, 4294901760
    %1404 = vmatpush.msra.mxu0 %v1403
    %v1405 = vand.u32 %v1384, 4294901760
    %1406 = vmatpush.msra.mxu0 %v1405
    %v1407 = vand.u32 %v1383, 4294901760
    %1408 = vmatpush.msra.mxu0 %v1407
    %v1409 = vand.u32 %v1382, 4294901760
    %1410 = vmatpush.msra.mxu0 %v1409
    %v1411 = vand.u32 %v1389, 4294901760
    %v1412 = vsub.f32 %v1389, %v1411
    %v1413 = vand.u32 %v1412, 4294901760
    %v1414 = vsub.f32 %v1412, %v1413
    %v1415 = vand.u32 %v1414, 4294901760
    %1416 = vmatmul.f32.gmra.mxu0 %v1415
    %v1417 = vpop.f32.mrf.mxu0
    %v1418 = vadd.f32 %v1387, %v1417
    %1419 = vdwg.mxu0
    %1420 = vmatpush.msra.mxu0 0.0
    %1421 = vmatpush.msra.mxu0 0.0
    %1422 = vmatpush.msra.mxu0 0.0
    %1423 = vmatpush.msra.mxu0 0.0
    %1424 = vmatpush.msra.mxu0 0.0
    %1425 = vmatpush.msra.mxu0 0.0
    %1426 = vmatpush.msra.mxu0 0.0
    %1427 = vmatpush.msra.mxu0 0.0
    %1428 = vmatpush.msra.mxu0 0.0
    %1429 = vmatpush.msra.mxu0 0.0
    %1430 = vmatpush.msra.mxu0 0.0
    %1431 = vmatpush.msra.mxu0 0.0
    %v1432 = vand.u32 %v1385, 4294901760
    %v1433 = vsub.f32 %v1385, %v1432
    %v1434 = vand.u32 %v1433, 4294901760
    %v1435 = vsub.f32 %v1433, %v1434
    %v1436 = vand.u32 %v1435, 4294901760
    %1437 = vmatpush.msra.mxu0 %v1436
    %v1438 = vand.u32 %v1384, 4294901760
    %v1439 = vsub.f32 %v1384, %v1438
    %v1440 = vand.u32 %v1439, 4294901760
    %v1441 = vsub.f32 %v1439, %v1440
    %v1442 = vand.u32 %v1441, 4294901760
    %1443 = vmatpush.msra.mxu0 %v1442
    %v1444 = vand.u32 %v1383, 4294901760
    %v1445 = vsub.f32 %v1383, %v1444
    %v1446 = vand.u32 %v1445, 4294901760
    %v1447 = vsub.f32 %v1445, %v1446
    %v1448 = vand.u32 %v1447, 4294901760
    %1449 = vmatpush.msra.mxu0 %v1448
    %v1450 = vand.u32 %v1382, 4294901760
    %v1451 = vsub.f32 %v1382, %v1450
    %v1452 = vand.u32 %v1451, 4294901760
    %v1453 = vsub.f32 %v1451, %v1452
    %v1454 = vand.u32 %v1453, 4294901760
    %1455 = vmatpush.msra.mxu0 %v1454
    %v1456 = vand.u32 %v1389, 4294901760
    %1457 = vmatmul.f32.gmra.mxu0 %v1456
    %v1458 = vpop.f32.mrf.mxu0
    %v1459 = vadd.f32 %v1418, %v1458
    %1460 = vdwg.mxu0
    %1461 = vmatpush.msra.mxu0 0.0
    %1462 = vmatpush.msra.mxu0 0.0
    %1463 = vmatpush.msra.mxu0 0.0
    %1464 = vmatpush.msra.mxu0 0.0
    %1465 = vmatpush.msra.mxu0 0.0
    %1466 = vmatpush.msra.mxu0 0.0
    %1467 = vmatpush.msra.mxu0 0.0
    %1468 = vmatpush.msra.mxu0 0.0
    %1469 = vmatpush.msra.mxu0 0.0
    %1470 = vmatpush.msra.mxu0 0.0
    %1471 = vmatpush.msra.mxu0 0.0
    %1472 = vmatpush.msra.mxu0 0.0
    %v1473 = vand.u32 %v1385, 4294901760
    %v1474 = vsub.f32 %v1385, %v1473
    %1475 = vmatpush.msra.mxu0 %v1474
    %v1476 = vand.u32 %v1384, 4294901760
    %v1477 = vsub.f32 %v1384, %v1476
    %1478 = vmatpush.msra.mxu0 %v1477
    %v1479 = vand.u32 %v1383, 4294901760
    %v1480 = vsub.f32 %v1383, %v1479
    %1481 = vmatpush.msra.mxu0 %v1480
    %v1482 = vand.u32 %v1382, 4294901760
    %v1483 = vsub.f32 %v1382, %v1482
    %1484 = vmatpush.msra.mxu0 %v1483
    %v1485 = vand.u32 %v1389, 4294901760
    %v1486 = vsub.f32 %v1389, %v1485
    %1487 = vmatmul.f32.gmra.mxu0 %v1486
    %v1488 = vpop.f32.mrf.mxu0
    %v1489 = vadd.f32 %v1459, %v1488
    %1490 = vdwg.mxu0
    %1491 = vmatpush.msra.mxu0 0.0
    %1492 = vmatpush.msra.mxu0 0.0
    %1493 = vmatpush.msra.mxu0 0.0
    %1494 = vmatpush.msra.mxu0 0.0
    %1495 = vmatpush.msra.mxu0 0.0
    %1496 = vmatpush.msra.mxu0 0.0
    %1497 = vmatpush.msra.mxu0 0.0
    %1498 = vmatpush.msra.mxu0 0.0
    %1499 = vmatpush.msra.mxu0 0.0
    %1500 = vmatpush.msra.mxu0 0.0
    %1501 = vmatpush.msra.mxu0 0.0
    %1502 = vmatpush.msra.mxu0 0.0
    %v1503 = vand.u32 %v1385, 4294901760
    %1504 = vmatpush.msra.mxu0 %v1503
    %v1505 = vand.u32 %v1384, 4294901760
    %1506 = vmatpush.msra.mxu0 %v1505
    %v1507 = vand.u32 %v1383, 4294901760
    %1508 = vmatpush.msra.mxu0 %v1507
    %v1509 = vand.u32 %v1382, 4294901760
    %1510 = vmatpush.msra.mxu0 %v1509
    %v1511 = vand.u32 %v1389, 4294901760
    %v1512 = vsub.f32 %v1389, %v1511
    %v1513 = vand.u32 %v1512, 4294901760
    %1514 = vmatmul.f32.gmra.mxu0 %v1513
    %v1515 = vpop.f32.mrf.mxu0
    %v1516 = vadd.f32 %v1489, %v1515
    %1517 = vdwg.mxu0
    %1518 = vmatpush.msra.mxu0 0.0
    %1519 = vmatpush.msra.mxu0 0.0
    %1520 = vmatpush.msra.mxu0 0.0
    %1521 = vmatpush.msra.mxu0 0.0
    %1522 = vmatpush.msra.mxu0 0.0
    %1523 = vmatpush.msra.mxu0 0.0
    %1524 = vmatpush.msra.mxu0 0.0
    %1525 = vmatpush.msra.mxu0 0.0
    %1526 = vmatpush.msra.mxu0 0.0
    %1527 = vmatpush.msra.mxu0 0.0
    %1528 = vmatpush.msra.mxu0 0.0
    %1529 = vmatpush.msra.mxu0 0.0
    %v1530 = vand.u32 %v1385, 4294901760
    %v1531 = vsub.f32 %v1385, %v1530
    %v1532 = vand.u32 %v1531, 4294901760
    %1533 = vmatpush.msra.mxu0 %v1532
    %v1534 = vand.u32 %v1384, 4294901760
    %v1535 = vsub.f32 %v1384, %v1534
    %v1536 = vand.u32 %v1535, 4294901760
    %1537 = vmatpush.msra.mxu0 %v1536
    %v1538 = vand.u32 %v1383, 4294901760
    %v1539 = vsub.f32 %v1383, %v1538
    %v1540 = vand.u32 %v1539, 4294901760
    %1541 = vmatpush.msra.mxu0 %v1540
    %v1542 = vand.u32 %v1382, 4294901760
    %v1543 = vsub.f32 %v1382, %v1542
    %v1544 = vand.u32 %v1543, 4294901760
    %1545 = vmatpush.msra.mxu0 %v1544
    %v1546 = vand.u32 %v1389, 4294901760
    %1547 = vmatmul.f32.gmra.mxu0 %v1546
    %v1548 = vpop.f32.mrf.mxu0
    %v1549 = vadd.f32 %v1516, %v1548
    %1550 = vdwg.mxu0
    %1551 = vmatpush.msra.mxu0 0.0
    %1552 = vmatpush.msra.mxu0 0.0
    %1553 = vmatpush.msra.mxu0 0.0
    %1554 = vmatpush.msra.mxu0 0.0
    %1555 = vmatpush.msra.mxu0 0.0
    %1556 = vmatpush.msra.mxu0 0.0
    %1557 = vmatpush.msra.mxu0 0.0
    %1558 = vmatpush.msra.mxu0 0.0
    %1559 = vmatpush.msra.mxu0 0.0
    %1560 = vmatpush.msra.mxu0 0.0
    %1561 = vmatpush.msra.mxu0 0.0
    %1562 = vmatpush.msra.mxu0 0.0
    %v1563 = vand.u32 %v1385, 4294901760
    %1564 = vmatpush.msra.mxu0 %v1563
    %v1565 = vand.u32 %v1384, 4294901760
    %1566 = vmatpush.msra.mxu0 %v1565
    %v1567 = vand.u32 %v1383, 4294901760
    %1568 = vmatpush.msra.mxu0 %v1567
    %v1569 = vand.u32 %v1382, 4294901760
    %1570 = vmatpush.msra.mxu0 %v1569
    %v1571 = vand.u32 %v1389, 4294901760
    %1572 = vmatmul.f32.gmra.mxu0 %v1571
    %v1573 = vpop.f32.mrf.mxu0
    %v1574 = vadd.f32 %v1549, %v1573
    %1575 = vdwg.mxu0
    %v1576 = vtanh.pop %v1574
    %v1577 = vld [vmem:[#allocation2 + $0x48] sm:$0xff]
    %v1578 = vld [vmem:[#allocation2 + $0x50] sm:$0xff]
    %v1579 = vld [vmem:[#allocation2 + $0x58] sm:$0xff]
    %v1580 = vld [vmem:[#allocation2 + $0x60] sm:$0xff]
    %v1582 = vsel %vm86, %v1576, 0
    %1584 = vmatpush.msra.mxu0 0.0
    %1585 = vmatpush.msra.mxu0 0.0
    %1586 = vmatpush.msra.mxu0 0.0
    %1587 = vmatpush.msra.mxu0 0.0
    %1588 = vmatpush.msra.mxu0 0.0
    %1589 = vmatpush.msra.mxu0 0.0
    %1590 = vmatpush.msra.mxu0 0.0
    %1591 = vmatpush.msra.mxu0 0.0
    %1592 = vmatpush.msra.mxu0 0.0
    %1593 = vmatpush.msra.mxu0 0.0
    %1594 = vmatpush.msra.mxu0 0.0
    %1595 = vmatpush.msra.mxu0 0.0
    %v1596 = vand.u32 %v1580, 4294901760
    %1597 = vmatpush.msra.mxu0 %v1596
    %v1598 = vand.u32 %v1579, 4294901760
    %1599 = vmatpush.msra.mxu0 %v1598
    %v1600 = vand.u32 %v1578, 4294901760
    %1601 = vmatpush.msra.mxu0 %v1600
    %v1602 = vand.u32 %v1577, 4294901760
    %1603 = vmatpush.msra.mxu0 %v1602
    %v1604 = vand.u32 %v1582, 4294901760
    %v1605 = vsub.f32 %v1582, %v1604
    %v1606 = vand.u32 %v1605, 4294901760
    %v1607 = vsub.f32 %v1605, %v1606
    %v1608 = vand.u32 %v1607, 4294901760
    %1609 = vmatmul.f32.gmra.mxu0 %v1608
    %v1610 = vpop.f32.mrf.mxu0
    %v1611 = vadd.f32 0.0, %v1610
    %1612 = vdwg.mxu0
    %1613 = vmatpush.msra.mxu0 0.0
    %1614 = vmatpush.msra.mxu0 0.0
    %1615 = vmatpush.msra.mxu0 0.0
    %1616 = vmatpush.msra.mxu0 0.0
    %1617 = vmatpush.msra.mxu0 0.0
    %1618 = vmatpush.msra.mxu0 0.0
    %1619 = vmatpush.msra.mxu0 0.0
    %1620 = vmatpush.msra.mxu0 0.0
    %1621 = vmatpush.msra.mxu0 0.0
    %1622 = vmatpush.msra.mxu0 0.0
    %1623 = vmatpush.msra.mxu0 0.0
    %1624 = vmatpush.msra.mxu0 0.0
    %v1625 = vand.u32 %v1580, 4294901760
    %v1626 = vsub.f32 %v1580, %v1625
    %v1627 = vand.u32 %v1626, 4294901760
    %v1628 = vsub.f32 %v1626, %v1627
    %v1629 = vand.u32 %v1628, 4294901760
    %1630 = vmatpush.msra.mxu0 %v1629
    %v1631 = vand.u32 %v1579, 4294901760
    %v1632 = vsub.f32 %v1579, %v1631
    %v1633 = vand.u32 %v1632, 4294901760
    %v1634 = vsub.f32 %v1632, %v1633
    %v1635 = vand.u32 %v1634, 4294901760
    %1636 = vmatpush.msra.mxu0 %v1635
    %v1637 = vand.u32 %v1578, 4294901760
    %v1638 = vsub.f32 %v1578, %v1637
    %v1639 = vand.u32 %v1638, 4294901760
    %v1640 = vsub.f32 %v1638, %v1639
    %v1641 = vand.u32 %v1640, 4294901760
    %1642 = vmatpush.msra.mxu0 %v1641
    %v1643 = vand.u32 %v1577, 4294901760
    %v1644 = vsub.f32 %v1577, %v1643
    %v1645 = vand.u32 %v1644, 4294901760
    %v1646 = vsub.f32 %v1644, %v1645
    %v1647 = vand.u32 %v1646, 4294901760
    %1648 = vmatpush.msra.mxu0 %v1647
    %v1649 = vand.u32 %v1582, 4294901760
    %1650 = vmatmul.f32.gmra.mxu0 %v1649
    %v1651 = vpop.f32.mrf.mxu0
    %v1652 = vadd.f32 %v1611, %v1651
    %1653 = vdwg.mxu0
    %1654 = vmatpush.msra.mxu0 0.0
    %1655 = vmatpush.msra.mxu0 0.0
    %1656 = vmatpush.msra.mxu0 0.0
    %1657 = vmatpush.msra.mxu0 0.0
    %1658 = vmatpush.msra.mxu0 0.0
    %1659 = vmatpush.msra.mxu0 0.0
    %1660 = vmatpush.msra.mxu0 0.0
    %1661 = vmatpush.msra.mxu0 0.0
    %1662 = vmatpush.msra.mxu0 0.0
    %1663 = vmatpush.msra.mxu0 0.0
    %1664 = vmatpush.msra.mxu0 0.0
    %1665 = vmatpush.msra.mxu0 0.0
    %v1666 = vand.u32 %v1580, 4294901760
    %v1667 = vsub.f32 %v1580, %v1666
    %1668 = vmatpush.msra.mxu0 %v1667
    %v1669 = vand.u32 %v1579, 4294901760
    %v1670 = vsub.f32 %v1579, %v1669
    %1671 = vmatpush.msra.mxu0 %v1670
    %v1672 = vand.u32 %v1578, 4294901760
    %v1673 = vsub.f32 %v1578, %v1672
    %1674 = vmatpush.msra.mxu0 %v1673
    %v1675 = vand.u32 %v1577, 4294901760
    %v1676 = vsub.f32 %v1577, %v1675
    %1677 = vmatpush.msra.mxu0 %v1676
    %v1678 = vand.u32 %v1582, 4294901760
    %v1679 = vsub.f32 %v1582, %v1678
    %1680 = vmatmul.f32.gmra.mxu0 %v1679
    %v1681 = vpop.f32.mrf.mxu0
    %v1682 = vadd.f32 %v1652, %v1681
    %1683 = vdwg.mxu0
    %1684 = vmatpush.msra.mxu0 0.0
    %1685 = vmatpush.msra.mxu0 0.0
    %1686 = vmatpush.msra.mxu0 0.0
    %1687 = vmatpush.msra.mxu0 0.0
    %1688 = vmatpush.msra.mxu0 0.0
    %1689 = vmatpush.msra.mxu0 0.0
    %1690 = vmatpush.msra.mxu0 0.0
    %1691 = vmatpush.msra.mxu0 0.0
    %1692 = vmatpush.msra.mxu0 0.0
    %1693 = vmatpush.msra.mxu0 0.0
    %1694 = vmatpush.msra.mxu0 0.0
    %1695 = vmatpush.msra.mxu0 0.0
    %v1696 = vand.u32 %v1580, 4294901760
    %1697 = vmatpush.msra.mxu0 %v1696
    %v1698 = vand.u32 %v1579, 4294901760
    %1699 = vmatpush.msra.mxu0 %v1698
    %v1700 = vand.u32 %v1578, 4294901760
    %1701 = vmatpush.msra.mxu0 %v1700
    %v1702 = vand.u32 %v1577, 4294901760
    %1703 = vmatpush.msra.mxu0 %v1702
    %v1704 = vand.u32 %v1582, 4294901760
    %v1705 = vsub.f32 %v1582, %v1704
    %v1706 = vand.u32 %v1705, 4294901760
    %1707 = vmatmul.f32.gmra.mxu0 %v1706
    %v1708 = vpop.f32.mrf.mxu0
    %v1709 = vadd.f32 %v1682, %v1708
    %1710 = vdwg.mxu0
    %1711 = vmatpush.msra.mxu0 0.0
    %1712 = vmatpush.msra.mxu0 0.0
    %1713 = vmatpush.msra.mxu0 0.0
    %1714 = vmatpush.msra.mxu0 0.0
    %1715 = vmatpush.msra.mxu0 0.0
    %1716 = vmatpush.msra.mxu0 0.0
    %1717 = vmatpush.msra.mxu0 0.0
    %1718 = vmatpush.msra.mxu0 0.0
    %1719 = vmatpush.msra.mxu0 0.0
    %1720 = vmatpush.msra.mxu0 0.0
    %1721 = vmatpush.msra.mxu0 0.0
    %1722 = vmatpush.msra.mxu0 0.0
    %v1723 = vand.u32 %v1580, 4294901760
    %v1724 = vsub.f32 %v1580, %v1723
    %v1725 = vand.u32 %v1724, 4294901760
    %1726 = vmatpush.msra.mxu0 %v1725
    %v1727 = vand.u32 %v1579, 4294901760
    %v1728 = vsub.f32 %v1579, %v1727
    %v1729 = vand.u32 %v1728, 4294901760
    %1730 = vmatpush.msra.mxu0 %v1729
    %v1731 = vand.u32 %v1578, 4294901760
    %v1732 = vsub.f32 %v1578, %v1731
    %v1733 = vand.u32 %v1732, 4294901760
    %1734 = vmatpush.msra.mxu0 %v1733
    %v1735 = vand.u32 %v1577, 4294901760
    %v1736 = vsub.f32 %v1577, %v1735
    %v1737 = vand.u32 %v1736, 4294901760
    %1738 = vmatpush.msra.mxu0 %v1737
    %v1739 = vand.u32 %v1582, 4294901760
    %1740 = vmatmul.f32.gmra.mxu0 %v1739
    %v1741 = vpop.f32.mrf.mxu0
    %v1742 = vadd.f32 %v1709, %v1741
    %1743 = vdwg.mxu0
    %1744 = vmatpush.msra.mxu0 0.0
    %1745 = vmatpush.msra.mxu0 0.0
    %1746 = vmatpush.msra.mxu0 0.0
    %1747 = vmatpush.msra.mxu0 0.0
    %1748 = vmatpush.msra.mxu0 0.0
    %1749 = vmatpush.msra.mxu0 0.0
    %1750 = vmatpush.msra.mxu0 0.0
    %1751 = vmatpush.msra.mxu0 0.0
    %1752 = vmatpush.msra.mxu0 0.0
    %1753 = vmatpush.msra.mxu0 0.0
    %1754 = vmatpush.msra.mxu0 0.0
    %1755 = vmatpush.msra.mxu0 0.0
    %v1756 = vand.u32 %v1580, 4294901760
    %1757 = vmatpush.msra.mxu0 %v1756
    %v1758 = vand.u32 %v1579, 4294901760
    %1759 = vmatpush.msra.mxu0 %v1758
    %v1760 = vand.u32 %v1578, 4294901760
    %1761 = vmatpush.msra.mxu0 %v1760
    %v1762 = vand.u32 %v1577, 4294901760
    %1763 = vmatpush.msra.mxu0 %v1762
    %v1764 = vand.u32 %v1582, 4294901760
    %1765 = vmatmul.f32.gmra.mxu0 %v1764
    %v1766 = vpop.f32.mrf.mxu0
    %v1767 = vadd.f32 %v1742, %v1766
    %1768 = vdwg.mxu0
    %v1769 = vld [vmem:[#allocation2 + $0xab] sm:$0x1]
    %v1770 = vperm.slane %v1769, 0
    %v1771 = vadd.f32 %v1767, %v1770
    %v1772 = vld [vmem:[#allocation2 + $0xac] sm:$0x1]
    %v1773 = vperm.slane %v1772, 0
    %1775 = vrot.lane.b32.xlu0 %v1773, 32
    %v1776 = vpop.permute.xlu0 %1775
    %v1778 = vadd.f32 %v1767, %v1776
    %v1779 = vld [vmem:[#allocation2 + $0xad] sm:$0x1]
    %v1780 = vperm.slane %v1779, 0
    %1782 = vrot.lane.b32.xlu0 %v1780, 64
    %v1783 = vpop.permute.xlu0 %1782
    %v1785 = vadd.f32 %v1767, %v1783
    %1787 = vrot.lane.b32.xlu0 %v1778, 96
    %v1788 = vpop.permute.xlu0 %1787
    %v1790 = vsel %vm86, %v1771, 0
    %v1792 = vsel %vm86, %v1788, 0
    %1794 = vmatpush.xpose.msra.mxu0 0.0
    %1795 = vmatpush.xpose.msra.mxu0 0.0
    %1796 = vmatpush.xpose.msra.mxu0 0.0
    %1797 = vmatpush.xpose.msra.mxu0 0.0
    %1798 = vmatpush.xpose.msra.mxu0 0.0
    %1799 = vmatpush.xpose.msra.mxu0 0.0
    %1800 = vmatpush.xpose.msra.mxu0 0.0
    %1801 = vmatpush.xpose.msra.mxu0 0.0
    %1802 = vmatpush.xpose.msra.mxu0 0.0
    %1803 = vmatpush.xpose.msra.mxu0 0.0
    %1804 = vmatpush.xpose.msra.mxu0 0.0
    %1805 = vmatpush.xpose.msra.mxu0 0.0
    %1806 = vmatpush.xpose.msra.mxu0 0.0
    %1807 = vmatpush.xpose.msra.mxu0 0.0
    %1808 = vmatpush.xpose.msra.mxu0 0.0
    %v1809 = vand.u32 %v1792, 4294901760
    %1810 = vmatpush.xpose.msra.mxu0 %v1809
    %v1811 = vand.u32 %v1790, 4294901760
    %v1812 = vsub.f32 %v1790, %v1811
    %v1813 = vand.u32 %v1812, 4294901760
    %v1814 = vsub.f32 %v1812, %v1813
    %v1815 = vand.u32 %v1814, 4294901760
    %1816 = vmatmul.f32.gmra.mxu0 %v1815
    %v1817 = vpop.f32.mrf.mxu0
    %v1818 = vadd.f32 0.0, %v1817
    %1819 = vdwg.mxu0
    %1820 = vmatpush.xpose.msra.mxu0 0.0
    %1821 = vmatpush.xpose.msra.mxu0 0.0
    %1822 = vmatpush.xpose.msra.mxu0 0.0
    %1823 = vmatpush.xpose.msra.mxu0 0.0
    %1824 = vmatpush.xpose.msra.mxu0 0.0
    %1825 = vmatpush.xpose.msra.mxu0 0.0
    %1826 = vmatpush.xpose.msra.mxu0 0.0
    %1827 = vmatpush.xpose.msra.mxu0 0.0
    %1828 = vmatpush.xpose.msra.mxu0 0.0
    %1829 = vmatpush.xpose.msra.mxu0 0.0
    %1830 = vmatpush.xpose.msra.mxu0 0.0
    %1831 = vmatpush.xpose.msra.mxu0 0.0
    %1832 = vmatpush.xpose.msra.mxu0 0.0
    %1833 = vmatpush.xpose.msra.mxu0 0.0
    %1834 = vmatpush.xpose.msra.mxu0 0.0
    %v1835 = vand.u32 %v1792, 4294901760
    %v1836 = vsub.f32 %v1792, %v1835
    %v1837 = vand.u32 %v1836, 4294901760
    %v1838 = vsub.f32 %v1836, %v1837
    %v1839 = vand.u32 %v1838, 4294901760
    %1840 = vmatpush.xpose.msra.mxu0 %v1839
    %v1841 = vand.u32 %v1790, 4294901760
    %1842 = vmatmul.f32.gmra.mxu0 %v1841
    %v1843 = vpop.f32.mrf.mxu0
    %v1844 = vadd.f32 %v1818, %v1843
    %1845 = vdwg.mxu0
    %1846 = vmatpush.xpose.msra.mxu0 0.0
    %1847 = vmatpush.xpose.msra.mxu0 0.0
    %1848 = vmatpush.xpose.msra.mxu0 0.0
    %1849 = vmatpush.xpose.msra.mxu0 0.0
    %1850 = vmatpush.xpose.msra.mxu0 0.0
    %1851 = vmatpush.xpose.msra.mxu0 0.0
    %1852 = vmatpush.xpose.msra.mxu0 0.0
    %1853 = vmatpush.xpose.msra.mxu0 0.0
    %1854 = vmatpush.xpose.msra.mxu0 0.0
    %1855 = vmatpush.xpose.msra.mxu0 0.0
    %1856 = vmatpush.xpose.msra.mxu0 0.0
    %1857 = vmatpush.xpose.msra.mxu0 0.0
    %1858 = vmatpush.xpose.msra.mxu0 0.0
    %1859 = vmatpush.xpose.msra.mxu0 0.0
    %1860 = vmatpush.xpose.msra.mxu0 0.0
    %v1861 = vand.u32 %v1792, 4294901760
    %v1862 = vsub.f32 %v1792, %v1861
    %1863 = vmatpush.xpose.msra.mxu0 %v1862
    %v1864 = vand.u32 %v1790, 4294901760
    %v1865 = vsub.f32 %v1790, %v1864
    %1866 = vmatmul.f32.gmra.mxu0 %v1865
    %v1867 = vpop.f32.mrf.mxu0
    %v1868 = vadd.f32 %v1844, %v1867
    %1869 = vdwg.mxu0
    %1870 = vmatpush.xpose.msra.mxu0 0.0
    %1871 = vmatpush.xpose.msra.mxu0 0.0
    %1872 = vmatpush.xpose.msra.mxu0 0.0
    %1873 = vmatpush.xpose.msra.mxu0 0.0
    %1874 = vmatpush.xpose.msra.mxu0 0.0
    %1875 = vmatpush.xpose.msra.mxu0 0.0
    %1876 = vmatpush.xpose.msra.mxu0 0.0
    %1877 = vmatpush.xpose.msra.mxu0 0.0
    %1878 = vmatpush.xpose.msra.mxu0 0.0
    %1879 = vmatpush.xpose.msra.mxu0 0.0
    %1880 = vmatpush.xpose.msra.mxu0 0.0
    %1881 = vmatpush.xpose.msra.mxu0 0.0
    %1882 = vmatpush.xpose.msra.mxu0 0.0
    %1883 = vmatpush.xpose.msra.mxu0 0.0
    %1884 = vmatpush.xpose.msra.mxu0 0.0
    %v1885 = vand.u32 %v1792, 4294901760
    %1886 = vmatpush.xpose.msra.mxu0 %v1885
    %v1887 = vand.u32 %v1790, 4294901760
    %v1888 = vsub.f32 %v1790, %v1887
    %v1889 = vand.u32 %v1888, 4294901760
    %1890 = vmatmul.f32.gmra.mxu0 %v1889
    %v1891 = vpop.f32.mrf.mxu0
    %v1892 = vadd.f32 %v1868, %v1891
    %1893 = vdwg.mxu0
    %1894 = vmatpush.xpose.msra.mxu0 0.0
    %1895 = vmatpush.xpose.msra.mxu0 0.0
    %1896 = vmatpush.xpose.msra.mxu0 0.0
    %1897 = vmatpush.xpose.msra.mxu0 0.0
    %1898 = vmatpush.xpose.msra.mxu0 0.0
    %1899 = vmatpush.xpose.msra.mxu0 0.0
    %1900 = vmatpush.xpose.msra.mxu0 0.0
    %1901 = vmatpush.xpose.msra.mxu0 0.0
    %1902 = vmatpush.xpose.msra.mxu0 0.0
    %1903 = vmatpush.xpose.msra.mxu0 0.0
    %1904 = vmatpush.xpose.msra.mxu0 0.0
    %1905 = vmatpush.xpose.msra.mxu0 0.0
    %1906 = vmatpush.xpose.msra.mxu0 0.0
    %1907 = vmatpush.xpose.msra.mxu0 0.0
    %1908 = vmatpush.xpose.msra.mxu0 0.0
    %v1909 = vand.u32 %v1792, 4294901760
    %v1910 = vsub.f32 %v1792, %v1909
    %v1911 = vand.u32 %v1910, 4294901760
    %1912 = vmatpush.xpose.msra.mxu0 %v1911
    %v1913 = vand.u32 %v1790, 4294901760
    %1914 = vmatmul.f32.gmra.mxu0 %v1913
    %v1915 = vpop.f32.mrf.mxu0
    %v1916 = vadd.f32 %v1892, %v1915
    %1917 = vdwg.mxu0
    %1918 = vmatpush.xpose.msra.mxu0 0.0
    %1919 = vmatpush.xpose.msra.mxu0 0.0
    %1920 = vmatpush.xpose.msra.mxu0 0.0
    %1921 = vmatpush.xpose.msra.mxu0 0.0
    %1922 = vmatpush.xpose.msra.mxu0 0.0
    %1923 = vmatpush.xpose.msra.mxu0 0.0
    %1924 = vmatpush.xpose.msra.mxu0 0.0
    %1925 = vmatpush.xpose.msra.mxu0 0.0
    %1926 = vmatpush.xpose.msra.mxu0 0.0
    %1927 = vmatpush.xpose.msra.mxu0 0.0
    %1928 = vmatpush.xpose.msra.mxu0 0.0
    %1929 = vmatpush.xpose.msra.mxu0 0.0
    %1930 = vmatpush.xpose.msra.mxu0 0.0
    %1931 = vmatpush.xpose.msra.mxu0 0.0
    %1932 = vmatpush.xpose.msra.mxu0 0.0
    %v1933 = vand.u32 %v1792, 4294901760
    %1934 = vmatpush.xpose.msra.mxu0 %v1933
    %v1935 = vand.u32 %v1790, 4294901760
    %1936 = vmatmul.f32.gmra.mxu0 %v1935
    %v1937 = vpop.f32.mrf.mxu0
    %v1938 = vadd.f32 %v1916, %v1937
    %1939 = vdwg.mxu0
    %v1940 = vmul.f32 %v1938, 0.25
    %vm1941 = vcmask 9216
    %v1942 = vsel %vm1941, %v1940, -inf
    %v1943 = vrot.slane %v1942, 4
    %v1944 = vmax.f32 %v1942, %v1943
    %v1945 = vrot.slane %v1944, 2
    %v1946 = vmax.f32 %v1944, %v1945
    %v1947 = vrot.slane %v1946, 1
    %v1948 = vmax.f32 %v1946, %v1947
    %v1949 = vsub.f32 %v1940, %v1948
    %v1950 = vmul.f32 %v1949, 1.442695
    %v1951 = vpow.pop %v1950
    %v1952 = vsel %vm1941, %v1951, 0.0
    %v1953 = vrot.slane %v1952, 4
    %v1954 = vadd.f32 %v1952, %v1953
    %v1955 = vrot.slane %v1954, 2
    %v1956 = vadd.f32 %v1954, %v1955
    %v1957 = vrot.slane %v1956, 1
    %v1958 = vadd.f32 %v1956, %v1957
    %v1959 = vrcp.pop %v1958
    %v1960 = vmul.f32 %v1958, %v1959
    %v1961 = vsub.f32 1.0, %v1960
    %v1962 = vmul.f32 %v1959, %v1961
    %v1963 = vadd.f32 %v1959, %v1962
    %vm1964 = vweird.f32 %v1958
    %vm1965 = vweird.f32 %v1959
    %vm1966 = vmor %vm1964, %vm1965
    %v1967 = vsel %vm1966, %v1959, %v1963
    %v1968 = vand.u32 2147483647, %v1958
    %vm1969 = vcmp.eq.f32.partialorder %v1968, 8.507059e+37
    %v1970 = vand.u32 %v1958, 2147483648
    %v1971 = vor.u32 1.1754944e-38, %v1970
    %v1972 = vsel %vm1969, %v1971, %v1967
    %v1973 = vmul.f32 %v1951, %v1972
    %1975 = vrot.lane.b32.xlu0 %v1785, 64
    %v1976 = vpop.permute.xlu0 %1975
    %vm1977 = vcmask 15360
    %v1979 = vsel %vm1977, %v1973, 0
    %vm1981 = vcmask 1041408
    %v1982 = vsel %vm1981, %v1976, 0
    %1984 = vmatpush.msra.mxu0 0.0
    %1985 = vmatpush.msra.mxu0 0.0
    %1986 = vmatpush.msra.mxu0 0.0
    %1987 = vmatpush.msra.mxu0 0.0
    %1988 = vmatpush.msra.mxu0 0.0
    %1989 = vmatpush.msra.mxu0 0.0
    %1990 = vmatpush.msra.mxu0 0.0
    %1991 = vmatpush.msra.mxu0 0.0
    %1992 = vmatpush.msra.mxu0 0.0
    %1993 = vmatpush.msra.mxu0 0.0
    %1994 = vmatpush.msra.mxu0 0.0
    %1995 = vmatpush.msra.mxu0 0.0
    %1996 = vmatpush.msra.mxu0 0.0
    %1997 = vmatpush.msra.mxu0 0.0
    %1998 = vmatpush.msra.mxu0 0.0
    %v1999 = vand.u32 %v1982, 4294901760
    %2000 = vmatpush.msra.mxu0 %v1999
    %v2001 = vand.u32 %v1979, 4294901760
    %v2002 = vsub.f32 %v1979, %v2001
    %v2003 = vand.u32 %v2002, 4294901760
    %v2004 = vsub.f32 %v2002, %v2003
    %v2005 = vand.u32 %v2004, 4294901760
    %2006 = vmatmul.f32.gmra.mxu0 %v2005
    %v2007 = vpop.f32.mrf.mxu0
    %v2008 = vadd.f32 0.0, %v2007
    %2009 = vdwg.mxu0
    %2010 = vmatpush.msra.mxu0 0.0
    %2011 = vmatpush.msra.mxu0 0.0
    %2012 = vmatpush.msra.mxu0 0.0
    %2013 = vmatpush.msra.mxu0 0.0
    %2014 = vmatpush.msra.mxu0 0.0
    %2015 = vmatpush.msra.mxu0 0.0
    %2016 = vmatpush.msra.mxu0 0.0
    %2017 = vmatpush.msra.mxu0 0.0
    %2018 = vmatpush.msra.mxu0 0.0
    %2019 = vmatpush.msra.mxu0 0.0
    %2020 = vmatpush.msra.mxu0 0.0
    %2021 = vmatpush.msra.mxu0 0.0
    %2022 = vmatpush.msra.mxu0 0.0
    %2023 = vmatpush.msra.mxu0 0.0
    %2024 = vmatpush.msra.mxu0 0.0
    %v2025 = vand.u32 %v1982, 4294901760
    %v2026 = vsub.f32 %v1982, %v2025
    %v2027 = vand.u32 %v2026, 4294901760
    %v2028 = vsub.f32 %v2026, %v2027
    %v2029 = vand.u32 %v2028, 4294901760
    %2030 = vmatpush.msra.mxu0 %v2029
    %v2031 = vand.u32 %v1979, 4294901760
    %2032 = vmatmul.f32.gmra.mxu0 %v2031
    %v2033 = vpop.f32.mrf.mxu0
    %v2034 = vadd.f32 %v2008, %v2033
    %2035 = vdwg.mxu0
    %2036 = vmatpush.msra.mxu0 0.0
    %2037 = vmatpush.msra.mxu0 0.0
    %2038 = vmatpush.msra.mxu0 0.0
    %2039 = vmatpush.msra.mxu0 0.0
    %2040 = vmatpush.msra.mxu0 0.0
    %2041 = vmatpush.msra.mxu0 0.0
    %2042 = vmatpush.msra.mxu0 0.0
    %2043 = vmatpush.msra.mxu0 0.0
    %2044 = vmatpush.msra.mxu0 0.0
    %2045 = vmatpush.msra.mxu0 0.0
    %2046 = vmatpush.msra.mxu0 0.0
    %2047 = vmatpush.msra.mxu0 0.0
    %2048 = vmatpush.msra.mxu0 0.0
    %2049 = vmatpush.msra.mxu0 0.0
    %2050 = vmatpush.msra.mxu0 0.0
    %v2051 = vand.u32 %v1982, 4294901760
    %v2052 = vsub.f32 %v1982, %v2051
    %2053 = vmatpush.msra.mxu0 %v2052
    %v2054 = vand.u32 %v1979, 4294901760
    %v2055 = vsub.f32 %v1979, %v2054
    %2056 = vmatmul.f32.gmra.mxu0 %v2055
    %v2057 = vpop.f32.mrf.mxu0
    %v2058 = vadd.f32 %v2034, %v2057
    %2059 = vdwg.mxu0
    %2060 = vmatpush.msra.mxu0 0.0
    %2061 = vmatpush.msra.mxu0 0.0
    %2062 = vmatpush.msra.mxu0 0.0
    %2063 = vmatpush.msra.mxu0 0.0
    %2064 = vmatpush.msra.mxu0 0.0
    %2065 = vmatpush.msra.mxu0 0.0
    %2066 = vmatpush.msra.mxu0 0.0
    %2067 = vmatpush.msra.mxu0 0.0
    %2068 = vmatpush.msra.mxu0 0.0
    %2069 = vmatpush.msra.mxu0 0.0
    %2070 = vmatpush.msra.mxu0 0.0
    %2071 = vmatpush.msra.mxu0 0.0
    %2072 = vmatpush.msra.mxu0 0.0
    %2073 = vmatpush.msra.mxu0 0.0
    %2074 = vmatpush.msra.mxu0 0.0
    %v2075 = vand.u32 %v1982, 4294901760
    %2076 = vmatpush.msra.mxu0 %v2075
    %v2077 = vand.u32 %v1979, 4294901760
    %v2078 = vsub.f32 %v1979, %v2077
    %v2079 = vand.u32 %v2078, 4294901760
    %2080 = vmatmul.f32.gmra.mxu0 %v2079
    %v2081 = vpop.f32.mrf.mxu0
    %v2082 = vadd.f32 %v2058, %v2081
    %2083 = vdwg.mxu0
    %2084 = vmatpush.msra.mxu0 0.0
    %2085 = vmatpush.msra.mxu0 0.0
    %2086 = vmatpush.msra.mxu0 0.0
    %2087 = vmatpush.msra.mxu0 0.0
    %2088 = vmatpush.msra.mxu0 0.0
    %2089 = vmatpush.msra.mxu0 0.0
    %2090 = vmatpush.msra.mxu0 0.0
    %2091 = vmatpush.msra.mxu0 0.0
    %2092 = vmatpush.msra.mxu0 0.0
    %2093 = vmatpush.msra.mxu0 0.0
    %2094 = vmatpush.msra.mxu0 0.0
    %2095 = vmatpush.msra.mxu0 0.0
    %2096 = vmatpush.msra.mxu0 0.0
    %2097 = vmatpush.msra.mxu0 0.0
    %2098 = vmatpush.msra.mxu0 0.0
    %v2099 = vand.u32 %v1982, 4294901760
    %v2100 = vsub.f32 %v1982, %v2099
    %v2101 = vand.u32 %v2100, 4294901760
    %2102 = vmatpush.msra.mxu0 %v2101
    %v2103 = vand.u32 %v1979, 4294901760
    %2104 = vmatmul.f32.gmra.mxu0 %v2103
    %v2105 = vpop.f32.mrf.mxu0
    %v2106 = vadd.f32 %v2082, %v2105
    %2107 = vdwg.mxu0
    %2108 = vmatpush.msra.mxu0 0.0
    %2109 = vmatpush.msra.mxu0 0.0
    %2110 = vmatpush.msra.mxu0 0.0
    %2111 = vmatpush.msra.mxu0 0.0
    %2112 = vmatpush.msra.mxu0 0.0
    %2113 = vmatpush.msra.mxu0 0.0
    %2114 = vmatpush.msra.mxu0 0.0
    %2115 = vmatpush.msra.mxu0 0.0
    %2116 = vmatpush.msra.mxu0 0.0
    %2117 = vmatpush.msra.mxu0 0.0
    %2118 = vmatpush.msra.mxu0 0.0
    %2119 = vmatpush.msra.mxu0 0.0
    %2120 = vmatpush.msra.mxu0 0.0
    %2121 = vmatpush.msra.mxu0 0.0
    %2122 = vmatpush.msra.mxu0 0.0
    %v2123 = vand.u32 %v1982, 4294901760
    %2124 = vmatpush.msra.mxu0 %v2123
    %v2125 = vand.u32 %v1979, 4294901760
    %2126 = vmatmul.f32.gmra.mxu0 %v2125
    %v2127 = vpop.f32.mrf.mxu0
    %v2128 = vadd.f32 %v2106, %v2127
    %2129 = vdwg.mxu0
    %2131 = vset.pattern.permute.xlu0 0
    %2132 = vperm.xlu0 %2131, %v38
    %v2133 = vpop.permute.xlu0 %2132
    %v2135 = vmul.f32 %v2133, %v2128
    %vm2136 = vcmask 254976
    %v2137 = vsel %vm2136, %v2135, 0.0
    %v2138 = vrot.slane %v2137, 4
    %v2139 = vadd.f32 %v2137, %v2138
    %v2140 = vrot.slane %v2139, 2
    %v2141 = vadd.f32 %v2139, %v2140
    %v2142 = vrot.slane %v2141, 1
    %v2143 = vadd.f32 %v2141, %v2142
    %v2144 = vld [vmem:[#allocation2 + $0x68] sm:$0xff]
    %v2145 = vld [vmem:[#allocation2 + $0x70] sm:$0xff]
    %v2146 = vld [vmem:[#allocation2 + $0x78] sm:$0xff]
    %v2147 = vld [vmem:[#allocation2 + $0x80] sm:$0xff]
    %v2148 = vld [vmem:[#allocation2 + $0xae] sm:$0x1]
    %v2150 = vsel %vm86, %v2143, 0
    %2152 = vmatpush.msra.mxu0 0.0
    %2153 = vmatpush.msra.mxu0 0.0
    %2154 = vmatpush.msra.mxu0 0.0
    %2155 = vmatpush.msra.mxu0 0.0
    %2156 = vmatpush.msra.mxu0 0.0
    %2157 = vmatpush.msra.mxu0 0.0
    %2158 = vmatpush.msra.mxu0 0.0
    %2159 = vmatpush.msra.mxu0 0.0
    %2160 = vmatpush.msra.mxu0 0.0
    %2161 = vmatpush.msra.mxu0 0.0
    %2162 = vmatpush.msra.mxu0 0.0
    %2163 = vmatpush.msra.mxu0 0.0
    %v2164 = vand.u32 %v2147, 4294901760
    %2165 = vmatpush.msra.mxu0 %v2164
    %v2166 = vand.u32 %v2146, 4294901760
    %2167 = vmatpush.msra.mxu0 %v2166
    %v2168 = vand.u32 %v2145, 4294901760
    %2169 = vmatpush.msra.mxu0 %v2168
    %v2170 = vand.u32 %v2144, 4294901760
    %2171 = vmatpush.msra.mxu0 %v2170
    %v2172 = vand.u32 %v2150, 4294901760
    %v2173 = vsub.f32 %v2150, %v2172
    %v2174 = vand.u32 %v2173, 4294901760
    %v2175 = vsub.f32 %v2173, %v2174
    %v2176 = vand.u32 %v2175, 4294901760
    %2177 = vmatmul.f32.gmra.mxu0 %v2176
    %v2178 = vpop.f32.mrf.mxu0
    %v2179 = vadd.f32 %v2148, %v2178
    %2180 = vdwg.mxu0
    %2181 = vmatpush.msra.mxu0 0.0
    %2182 = vmatpush.msra.mxu0 0.0
    %2183 = vmatpush.msra.mxu0 0.0
    %2184 = vmatpush.msra.mxu0 0.0
    %2185 = vmatpush.msra.mxu0 0.0
    %2186 = vmatpush.msra.mxu0 0.0
    %2187 = vmatpush.msra.mxu0 0.0
    %2188 = vmatpush.msra.mxu0 0.0
    %2189 = vmatpush.msra.mxu0 0.0
    %2190 = vmatpush.msra.mxu0 0.0
    %2191 = vmatpush.msra.mxu0 0.0
    %2192 = vmatpush.msra.mxu0 0.0
    %v2193 = vand.u32 %v2147, 4294901760
    %v2194 = vsub.f32 %v2147, %v2193
    %v2195 = vand.u32 %v2194, 4294901760
    %v2196 = vsub.f32 %v2194, %v2195
    %v2197 = vand.u32 %v2196, 4294901760
    %2198 = vmatpush.msra.mxu0 %v2197
    %v2199 = vand.u32 %v2146, 4294901760
    %v2200 = vsub.f32 %v2146, %v2199
    %v2201 = vand.u32 %v2200, 4294901760
    %v2202 = vsub.f32 %v2200, %v2201
    %v2203 = vand.u32 %v2202, 4294901760
    %2204 = vmatpush.msra.mxu0 %v2203
    %v2205 = vand.u32 %v2145, 4294901760
    %v2206 = vsub.f32 %v2145, %v2205
    %v2207 = vand.u32 %v2206, 4294901760
    %v2208 = vsub.f32 %v2206, %v2207
    %v2209 = vand.u32 %v2208, 4294901760
    %2210 = vmatpush.msra.mxu0 %v2209
    %v2211 = vand.u32 %v2144, 4294901760
    %v2212 = vsub.f32 %v2144, %v2211
    %v2213 = vand.u32 %v2212, 4294901760
    %v2214 = vsub.f32 %v2212, %v2213
    %v2215 = vand.u32 %v2214, 4294901760
    %2216 = vmatpush.msra.mxu0 %v2215
    %v2217 = vand.u32 %v2150, 4294901760
    %2218 = vmatmul.f32.gmra.mxu0 %v2217
    %v2219 = vpop.f32.mrf.mxu0
    %v2220 = vadd.f32 %v2179, %v2219
    %2221 = vdwg.mxu0
    %2222 = vmatpush.msra.mxu0 0.0
    %2223 = vmatpush.msra.mxu0 0.0
    %2224 = vmatpush.msra.mxu0 0.0
    %2225 = vmatpush.msra.mxu0 0.0
    %2226 = vmatpush.msra.mxu0 0.0
    %2227 = vmatpush.msra.mxu0 0.0
    %2228 = vmatpush.msra.mxu0 0.0
    %2229 = vmatpush.msra.mxu0 0.0
    %2230 = vmatpush.msra.mxu0 0.0
    %2231 = vmatpush.msra.mxu0 0.0
    %2232 = vmatpush.msra.mxu0 0.0
    %2233 = vmatpush.msra.mxu0 0.0
    %v2234 = vand.u32 %v2147, 4294901760
    %v2235 = vsub.f32 %v2147, %v2234
    %2236 = vmatpush.msra.mxu0 %v2235
    %v2237 = vand.u32 %v2146, 4294901760
    %v2238 = vsub.f32 %v2146, %v2237
    %2239 = vmatpush.msra.mxu0 %v2238
    %v2240 = vand.u32 %v2145, 4294901760
    %v2241 = vsub.f32 %v2145, %v2240
    %2242 = vmatpush.msra.mxu0 %v2241
    %v2243 = vand.u32 %v2144, 4294901760
    %v2244 = vsub.f32 %v2144, %v2243
    %2245 = vmatpush.msra.mxu0 %v2244
    %v2246 = vand.u32 %v2150, 4294901760
    %v2247 = vsub.f32 %v2150, %v2246
    %2248 = vmatmul.f32.gmra.mxu0 %v2247
    %v2249 = vpop.f32.mrf.mxu0
    %v2250 = vadd.f32 %v2220, %v2249
    %2251 = vdwg.mxu0
    %2252 = vmatpush.msra.mxu0 0.0
    %2253 = vmatpush.msra.mxu0 0.0
    %2254 = vmatpush.msra.mxu0 0.0
    %2255 = vmatpush.msra.mxu0 0.0
    %2256 = vmatpush.msra.mxu0 0.0
    %2257 = vmatpush.msra.mxu0 0.0
    %2258 = vmatpush.msra.mxu0 0.0
    %2259 = vmatpush.msra.mxu0 0.0
    %2260 = vmatpush.msra.mxu0 0.0
    %2261 = vmatpush.msra.mxu0 0.0
    %2262 = vmatpush.msra.mxu0 0.0
    %2263 = vmatpush.msra.mxu0 0.0
    %v2264 = vand.u32 %v2147, 4294901760
    %2265 = vmatpush.msra.mxu0 %v2264
    %v2266 = vand.u32 %v2146, 4294901760
    %2267 = vmatpush.msra.mxu0 %v2266
    %v2268 = vand.u32 %v2145, 4294901760
    %2269 = vmatpush.msra.mxu0 %v2268
    %v2270 = vand.u32 %v2144, 4294901760
    %2271 = vmatpush.msra.mxu0 %v2270
    %v2272 = vand.u32 %v2150, 4294901760
    %v2273 = vsub.f32 %v2150, %v2272
    %v2274 = vand.u32 %v2273, 4294901760
    %2275 = vmatmul.f32.gmra.mxu0 %v2274
    %v2276 = vpop.f32.mrf.mxu0
    %v2277 = vadd.f32 %v2250, %v2276
    %2278 = vdwg.mxu0
    %2279 = vmatpush.msra.mxu0 0.0
    %2280 = vmatpush.msra.mxu0 0.0
    %2281 = vmatpush.msra.mxu0 0.0
    %2282 = vmatpush.msra.mxu0 0.0
    %2283 = vmatpush.msra.mxu0 0.0
    %2284 = vmatpush.msra.mxu0 0.0
    %2285 = vmatpush.msra.mxu0 0.0
    %2286 = vmatpush.msra.mxu0 0.0
    %2287 = vmatpush.msra.mxu0 0.0
    %2288 = vmatpush.msra.mxu0 0.0
    %2289 = vmatpush.msra.mxu0 0.0
    %2290 = vmatpush.msra.mxu0 0.0
    %v2291 = vand.u32 %v2147, 4294901760
    %v2292 = vsub.f32 %v2147, %v2291
    %v2293 = vand.u32 %v2292, 4294901760
    %2294 = vmatpush.msra.mxu0 %v2293
    %v2295 = vand.u32 %v2146, 4294901760
    %v2296 = vsub.f32 %v2146, %v2295
    %v2297 = vand.u32 %v2296, 4294901760
    %2298 = vmatpush.msra.mxu0 %v2297
    %v2299 = vand.u32 %v2145, 4294901760
    %v2300 = vsub.f32 %v2145, %v2299
    %v2301 = vand.u32 %v2300, 4294901760
    %2302 = vmatpush.msra.mxu0 %v2301
    %v2303 = vand.u32 %v2144, 4294901760
    %v2304 = vsub.f32 %v2144, %v2303
    %v2305 = vand.u32 %v2304, 4294901760
    %2306 = vmatpush.msra.mxu0 %v2305
    %v2307 = vand.u32 %v2150, 4294901760
    %2308 = vmatmul.f32.gmra.mxu0 %v2307
    %v2309 = vpop.f32.mrf.mxu0
    %v2310 = vadd.f32 %v2277, %v2309
    %2311 = vdwg.mxu0
    %2312 = vmatpush.msra.mxu0 0.0
    %2313 = vmatpush.msra.mxu0 0.0
    %2314 = vmatpush.msra.mxu0 0.0
    %2315 = vmatpush.msra.mxu0 0.0
    %2316 = vmatpush.msra.mxu0 0.0
    %2317 = vmatpush.msra.mxu0 0.0
    %2318 = vmatpush.msra.mxu0 0.0
    %2319 = vmatpush.msra.mxu0 0.0
    %2320 = vmatpush.msra.mxu0 0.0
    %2321 = vmatpush.msra.mxu0 0.0
    %2322 = vmatpush.msra.mxu0 0.0
    %2323 = vmatpush.msra.mxu0 0.0
    %v2324 = vand.u32 %v2147, 4294901760
    %2325 = vmatpush.msra.mxu0 %v2324
    %v2326 = vand.u32 %v2146, 4294901760
    %2327 = vmatpush.msra.mxu0 %v2326
    %v2328 = vand.u32 %v2145, 4294901760
    %2329 = vmatpush.msra.mxu0 %v2328
    %v2330 = vand.u32 %v2144, 4294901760
    %2331 = vmatpush.msra.mxu0 %v2330
    %v2332 = vand.u32 %v2150, 4294901760
    %2333 = vmatmul.f32.gmra.mxu0 %v2332
    %v2334 = vpop.f32.mrf.mxu0
    %v2335 = vadd.f32 %v2310, %v2334
    %2336 = vdwg.mxu0
    %v2337 = vmax.f32 %v2335, 0.0
    %v2338 = vld [vmem:[#allocation2 + $0x88] sm:$0xff]
    %v2339 = vld [vmem:[#allocation2 + $0x90] sm:$0xff]
    %v2340 = vld [vmem:[#allocation2 + $0xaf] sm:$0x1]
    %v2342 = vsel %vm309, %v2337, 0
    %2344 = vmatpush.msra.mxu0 0.0
    %2345 = vmatpush.msra.mxu0 0.0
    %2346 = vmatpush.msra.mxu0 0.0
    %2347 = vmatpush.msra.mxu0 0.0
    %2348 = vmatpush.msra.mxu0 0.0
    %2349 = vmatpush.msra.mxu0 0.0
    %2350 = vmatpush.msra.mxu0 0.0
    %2351 = vmatpush.msra.mxu0 0.0
    %2352 = vmatpush.msra.mxu0 0.0
    %2353 = vmatpush.msra.mxu0 0.0
    %2354 = vmatpush.msra.mxu0 0.0
    %2355 = vmatpush.msra.mxu0 0.0
    %2356 = vmatpush.msra.mxu0 0.0
    %2357 = vmatpush.msra.mxu0 0.0
    %v2358 = vand.u32 %v2339, 4294901760
    %2359 = vmatpush.msra.mxu0 %v2358
    %v2360 = vand.u32 %v2338, 4294901760
    %2361 = vmatpush.msra.mxu0 %v2360
    %v2362 = vand.u32 %v2342, 4294901760
    %v2363 = vsub.f32 %v2342, %v2362
    %v2364 = vand.u32 %v2363, 4294901760
    %v2365 = vsub.f32 %v2363, %v2364
    %v2366 = vand.u32 %v2365, 4294901760
    %2367 = vmatmul.f32.gmra.mxu0 %v2366
    %v2368 = vpop.f32.mrf.mxu0
    %v2369 = vadd.f32 %v2340, %v2368
    %2370 = vdwg.mxu0
    %2371 = vmatpush.msra.mxu0 0.0
    %2372 = vmatpush.msra.mxu0 0.0
    %2373 = vmatpush.msra.mxu0 0.0
    %2374 = vmatpush.msra.mxu0 0.0
    %2375 = vmatpush.msra.mxu0 0.0
    %2376 = vmatpush.msra.mxu0 0.0
    %2377 = vmatpush.msra.mxu0 0.0
    %2378 = vmatpush.msra.mxu0 0.0
    %2379 = vmatpush.msra.mxu0 0.0
    %2380 = vmatpush.msra.mxu0 0.0
    %2381 = vmatpush.msra.mxu0 0.0
    %2382 = vmatpush.msra.mxu0 0.0
    %2383 = vmatpush.msra.mxu0 0.0
    %2384 = vmatpush.msra.mxu0 0.0
    %v2385 = vand.u32 %v2339, 4294901760
    %v2386 = vsub.f32 %v2339, %v2385
    %v2387 = vand.u32 %v2386, 4294901760
    %v2388 = vsub.f32 %v2386, %v2387
    %v2389 = vand.u32 %v2388, 4294901760
    %2390 = vmatpush.msra.mxu0 %v2389
    %v2391 = vand.u32 %v2338, 4294901760
    %v2392 = vsub.f32 %v2338, %v2391
    %v2393 = vand.u32 %v2392, 4294901760
    %v2394 = vsub.f32 %v2392, %v2393
    %v2395 = vand.u32 %v2394, 4294901760
    %2396 = vmatpush.msra.mxu0 %v2395
    %v2397 = vand.u32 %v2342, 4294901760
    %2398 = vmatmul.f32.gmra.mxu0 %v2397
    %v2399 = vpop.f32.mrf.mxu0
    %v2400 = vadd.f32 %v2369, %v2399
    %2401 = vdwg.mxu0
    %2402 = vmatpush.msra.mxu0 0.0
    %2403 = vmatpush.msra.mxu0 0.0
    %2404 = vmatpush.msra.mxu0 0.0
    %2405 = vmatpush.msra.mxu0 0.0
    %2406 = vmatpush.msra.mxu0 0.0
    %2407 = vmatpush.msra.mxu0 0.0
    %2408 = vmatpush.msra.mxu0 0.0
    %2409 = vmatpush.msra.mxu0 0.0
    %2410 = vmatpush.msra.mxu0 0.0
    %2411 = vmatpush.msra.mxu0 0.0
    %2412 = vmatpush.msra.mxu0 0.0
    %2413 = vmatpush.msra.mxu0 0.0
    %2414 = vmatpush.msra.mxu0 0.0
    %2415 = vmatpush.msra.mxu0 0.0
    %v2416 = vand.u32 %v2339, 4294901760
    %v2417 = vsub.f32 %v2339, %v2416
    %2418 = vmatpush.msra.mxu0 %v2417
    %v2419 = vand.u32 %v2338, 4294901760
    %v2420 = vsub.f32 %v2338, %v2419
    %2421 = vmatpush.msra.mxu0 %v2420
    %v2422 = vand.u32 %v2342, 4294901760
    %v2423 = vsub.f32 %v2342, %v2422
    %2424 = vmatmul.f32.gmra.mxu0 %v2423
    %v2425 = vpop.f32.mrf.mxu0
    %v2426 = vadd.f32 %v2400, %v2425
    %2427 = vdwg.mxu0
    %2428 = vmatpush.msra.mxu0 0.0
    %2429 = vmatpush.msra.mxu0 0.0
    %2430 = vmatpush.msra.mxu0 0.0
    %2431 = vmatpush.msra.mxu0 0.0
    %2432 = vmatpush.msra.mxu0 0.0
    %2433 = vmatpush.msra.mxu0 0.0
    %2434 = vmatpush.msra.mxu0 0.0
    %2435 = vmatpush.msra.mxu0 0.0
    %2436 = vmatpush.msra.mxu0 0.0
    %2437 = vmatpush.msra.mxu0 0.0
    %2438 = vmatpush.msra.mxu0 0.0
    %2439 = vmatpush.msra.mxu0 0.0
    %2440 = vmatpush.msra.mxu0 0.0
    %2441 = vmatpush.msra.mxu0 0.0
    %v2442 = vand.u32 %v2339, 4294901760
    %2443 = vmatpush.msra.mxu0 %v2442
    %v2444 = vand.u32 %v2338, 4294901760
    %2445 = vmatpush.msra.mxu0 %v2444
    %v2446 = vand.u32 %v2342, 4294901760
    %v2447 = vsub.f32 %v2342, %v2446
    %v2448 = vand.u32 %v2447, 4294901760
    %2449 = vmatmul.f32.gmra.mxu0 %v2448
    %v2450 = vpop.f32.mrf.mxu0
    %v2451 = vadd.f32 %v2426, %v2450
    %2452 = vdwg.mxu0
    %2453 = vmatpush.msra.mxu0 0.0
    %2454 = vmatpush.msra.mxu0 0.0
    %2455 = vmatpush.msra.mxu0 0.0
    %2456 = vmatpush.msra.mxu0 0.0
    %2457 = vmatpush.msra.mxu0 0.0
    %2458 = vmatpush.msra.mxu0 0.0
    %2459 = vmatpush.msra.mxu0 0.0
    %2460 = vmatpush.msra.mxu0 0.0
    %2461 = vmatpush.msra.mxu0 0.0
    %2462 = vmatpush.msra.mxu0 0.0
    %2463 = vmatpush.msra.mxu0 0.0
    %2464 = vmatpush.msra.mxu0 0.0
    %2465 = vmatpush.msra.mxu0 0.0
    %2466 = vmatpush.msra.mxu0 0.0
    %v2467 = vand.u32 %v2339, 4294901760
    %v2468 = vsub.f32 %v2339, %v2467
    %v2469 = vand.u32 %v2468, 4294901760
    %2470 = vmatpush.msra.mxu0 %v2469
    %v2471 = vand.u32 %v2338, 4294901760
    %v2472 = vsub.f32 %v2338, %v2471
    %v2473 = vand.u32 %v2472, 4294901760
    %2474 = vmatpush.msra.mxu0 %v2473
    %v2475 = vand.u32 %v2342, 4294901760
    %2476 = vmatmul.f32.gmra.mxu0 %v2475
    %v2477 = vpop.f32.mrf.mxu0
    %v2478 = vadd.f32 %v2451, %v2477
    %2479 = vdwg.mxu0
    %2480 = vmatpush.msra.mxu0 0.0
    %2481 = vmatpush.msra.mxu0 0.0
    %2482 = vmatpush.msra.mxu0 0.0
    %2483 = vmatpush.msra.mxu0 0.0
    %2484 = vmatpush.msra.mxu0 0.0
    %2485 = vmatpush.msra.mxu0 0.0
    %2486 = vmatpush.msra.mxu0 0.0
    %2487 = vmatpush.msra.mxu0 0.0
    %2488 = vmatpush.msra.mxu0 0.0
    %2489 = vmatpush.msra.mxu0 0.0
    %2490 = vmatpush.msra.mxu0 0.0
    %2491 = vmatpush.msra.mxu0 0.0
    %2492 = vmatpush.msra.mxu0 0.0
    %2493 = vmatpush.msra.mxu0 0.0
    %v2494 = vand.u32 %v2339, 4294901760
    %2495 = vmatpush.msra.mxu0 %v2494
    %v2496 = vand.u32 %v2338, 4294901760
    %2497 = vmatpush.msra.mxu0 %v2496
    %v2498 = vand.u32 %v2342, 4294901760
    %2499 = vmatmul.f32.gmra.mxu0 %v2498
    %v2500 = vpop.f32.mrf.mxu0
    %v2501 = vadd.f32 %v2478, %v2500
    %2502 = vdwg.mxu0
    %v2503 = vmax.f32 %v2501, 0.0
    %v2504 = vld [vmem:[#allocation2 + $0x98] sm:$0xff]
    %v2505 = vld [vmem:[#allocation2 + $0xa0] sm:$0xff]
    %v2507 = vsel %vm309, %v2503, 0
    %2509 = vmatpush.msra.mxu0 0.0
    %2510 = vmatpush.msra.mxu0 0.0
    %2511 = vmatpush.msra.mxu0 0.0
    %2512 = vmatpush.msra.mxu0 0.0
    %2513 = vmatpush.msra.mxu0 0.0
    %2514 = vmatpush.msra.mxu0 0.0
    %2515 = vmatpush.msra.mxu0 0.0
    %2516 = vmatpush.msra.mxu0 0.0
    %2517 = vmatpush.msra.mxu0 0.0
    %2518 = vmatpush.msra.mxu0 0.0
    %2519 = vmatpush.msra.mxu0 0.0
    %2520 = vmatpush.msra.mxu0 0.0
    %2521 = vmatpush.msra.mxu0 0.0
    %2522 = vmatpush.msra.mxu0 0.0
    %v2523 = vand.u32 %v2505, 4294901760
    %2524 = vmatpush.msra.mxu0 %v2523
    %v2525 = vand.u32 %v2504, 4294901760
    %2526 = vmatpush.msra.mxu0 %v2525
    %v2527 = vand.u32 %v2507, 4294901760
    %v2528 = vsub.f32 %v2507, %v2527
    %v2529 = vand.u32 %v2528, 4294901760
    %v2530 = vsub.f32 %v2528, %v2529
    %v2531 = vand.u32 %v2530, 4294901760
    %2532 = vmatmul.f32.gmra.mxu0 %v2531
    %v2533 = vpop.f32.mrf.mxu0
    %v2534 = vadd.f32 0.0, %v2533
    %2535 = vdwg.mxu0
    %2536 = vmatpush.msra.mxu0 0.0
    %2537 = vmatpush.msra.mxu0 0.0
    %2538 = vmatpush.msra.mxu0 0.0
    %2539 = vmatpush.msra.mxu0 0.0
    %2540 = vmatpush.msra.mxu0 0.0
    %2541 = vmatpush.msra.mxu0 0.0
    %2542 = vmatpush.msra.mxu0 0.0
    %2543 = vmatpush.msra.mxu0 0.0
    %2544 = vmatpush.msra.mxu0 0.0
    %2545 = vmatpush.msra.mxu0 0.0
    %2546 = vmatpush.msra.mxu0 0.0
    %2547 = vmatpush.msra.mxu0 0.0
    %2548 = vmatpush.msra.mxu0 0.0
    %2549 = vmatpush.msra.mxu0 0.0
    %v2550 = vand.u32 %v2505, 4294901760
    %v2551 = vsub.f32 %v2505, %v2550
    %v2552 = vand.u32 %v2551, 4294901760
    %v2553 = vsub.f32 %v2551, %v2552
    %v2554 = vand.u32 %v2553, 4294901760
    %2555 = vmatpush.msra.mxu0 %v2554
    %v2556 = vand.u32 %v2504, 4294901760
    %v2557 = vsub.f32 %v2504, %v2556
    %v2558 = vand.u32 %v2557, 4294901760
    %v2559 = vsub.f32 %v2557, %v2558
    %v2560 = vand.u32 %v2559, 4294901760
    %2561 = vmatpush.msra.mxu0 %v2560
    %v2562 = vand.u32 %v2507, 4294901760
    %2563 = vmatmul.f32.gmra.mxu0 %v2562
    %v2564 = vpop.f32.mrf.mxu0
    %v2565 = vadd.f32 %v2534, %v2564
    %2566 = vdwg.mxu0
    %2567 = vmatpush.msra.mxu0 0.0
    %2568 = vmatpush.msra.mxu0 0.0
    %2569 = vmatpush.msra.mxu0 0.0
    %2570 = vmatpush.msra.mxu0 0.0
    %2571 = vmatpush.msra.mxu0 0.0
    %2572 = vmatpush.msra.mxu0 0.0
    %2573 = vmatpush.msra.mxu0 0.0
    %2574 = vmatpush.msra.mxu0 0.0
    %2575 = vmatpush.msra.mxu0 0.0
    %2576 = vmatpush.msra.mxu0 0.0
    %2577 = vmatpush.msra.mxu0 0.0
    %2578 = vmatpush.msra.mxu0 0.0
    %2579 = vmatpush.msra.mxu0 0.0
    %2580 = vmatpush.msra.mxu0 0.0
    %v2581 = vand.u32 %v2505, 4294901760
    %v2582 = vsub.f32 %v2505, %v2581
    %2583 = vmatpush.msra.mxu0 %v2582
    %v2584 = vand.u32 %v2504, 4294901760
    %v2585 = vsub.f32 %v2504, %v2584
    %2586 = vmatpush.msra.mxu0 %v2585
    %v2587 = vand.u32 %v2507, 4294901760
    %v2588 = vsub.f32 %v2507, %v2587
    %2589 = vmatmul.f32.gmra.mxu0 %v2588
    %v2590 = vpop.f32.mrf.mxu0
    %v2591 = vadd.f32 %v2565, %v2590
    %2592 = vdwg.mxu0
    %2593 = vmatpush.msra.mxu0 0.0
    %2594 = vmatpush.msra.mxu0 0.0
    %2595 = vmatpush.msra.mxu0 0.0
    %2596 = vmatpush.msra.mxu0 0.0
    %2597 = vmatpush.msra.mxu0 0.0
    %2598 = vmatpush.msra.mxu0 0.0
    %2599 = vmatpush.msra.mxu0 0.0
    %2600 = vmatpush.msra.mxu0 0.0
    %2601 = vmatpush.msra.mxu0 0.0
    %2602 = vmatpush.msra.mxu0 0.0
    %2603 = vmatpush.msra.mxu0 0.0
    %2604 = vmatpush.msra.mxu0 0.0
    %2605 = vmatpush.msra.mxu0 0.0
    %2606 = vmatpush.msra.mxu0 0.0
    %v2607 = vand.u32 %v2505, 4294901760
    %2608 = vmatpush.msra.mxu0 %v2607
    %v2609 = vand.u32 %v2504, 4294901760
    %2610 = vmatpush.msra.mxu0 %v2609
    %v2611 = vand.u32 %v2507, 4294901760
    %v2612 = vsub.f32 %v2507, %v2611
    %v2613 = vand.u32 %v2612, 4294901760
    %2614 = vmatmul.f32.gmra.mxu0 %v2613
    %v2615 = vpop.f32.mrf.mxu0
    %v2616 = vadd.f32 %v2591, %v2615
    %2617 = vdwg.mxu0
    %2618 = vmatpush.msra.mxu0 0.0
    %2619 = vmatpush.msra.mxu0 0.0
    %2620 = vmatpush.msra.mxu0 0.0
    %2621 = vmatpush.msra.mxu0 0.0
    %2622 = vmatpush.msra.mxu0 0.0
    %2623 = vmatpush.msra.mxu0 0.0
    %2624 = vmatpush.msra.mxu0 0.0
    %2625 = vmatpush.msra.mxu0 0.0
    %2626 = vmatpush.msra.mxu0 0.0
    %2627 = vmatpush.msra.mxu0 0.0
    %2628 = vmatpush.msra.mxu0 0.0
    %2629 = vmatpush.msra.mxu0 0.0
    %2630 = vmatpush.msra.mxu0 0.0
    %2631 = vmatpush.msra.mxu0 0.0
    %v2632 = vand.u32 %v2505, 4294901760
    %v2633 = vsub.f32 %v2505, %v2632
    %v2634 = vand.u32 %v2633, 4294901760
    %2635 = vmatpush.msra.mxu0 %v2634
    %v2636 = vand.u32 %v2504, 4294901760
    %v2637 = vsub.f32 %v2504, %v2636
    %v2638 = vand.u32 %v2637, 4294901760
    %2639 = vmatpush.msra.mxu0 %v2638
    %v2640 = vand.u32 %v2507, 4294901760
    %2641 = vmatmul.f32.gmra.mxu0 %v2640
    %v2642 = vpop.f32.mrf.mxu0
    %v2643 = vadd.f32 %v2616, %v2642
    %2644 = vdwg.mxu0
    %2645 = vmatpush.msra.mxu0 0.0
    %2646 = vmatpush.msra.mxu0 0.0
    %2647 = vmatpush.msra.mxu0 0.0
    %2648 = vmatpush.msra.mxu0 0.0
    %2649 = vmatpush.msra.mxu0 0.0
    %2650 = vmatpush.msra.mxu0 0.0
    %2651 = vmatpush.msra.mxu0 0.0
    %2652 = vmatpush.msra.mxu0 0.0
    %2653 = vmatpush.msra.mxu0 0.0
    %2654 = vmatpush.msra.mxu0 0.0
    %2655 = vmatpush.msra.mxu0 0.0
    %2656 = vmatpush.msra.mxu0 0.0
    %2657 = vmatpush.msra.mxu0 0.0
    %2658 = vmatpush.msra.mxu0 0.0
    %v2659 = vand.u32 %v2505, 4294901760
    %2660 = vmatpush.msra.mxu0 %v2659
    %v2661 = vand.u32 %v2504, 4294901760
    %2662 = vmatpush.msra.mxu0 %v2661
    %v2663 = vand.u32 %v2507, 4294901760
    %2664 = vmatmul.f32.gmra.mxu0 %v2663
    %v2665 = vpop.f32.mrf.mxu0
    %v2666 = vadd.f32 %v2643, %v2665
    %2667 = vdwg.mxu0
    %v2668 = vld [vmem:[#allocation2 + $0xb0] sm:$0x1]
    %v2669 = vadd.f32 %v2666, %v2668
    %vm2670 = vcmask 0
    %2671 = vst.msk [vmem:[#allocation5] sm:$0x1] %vm2670, %v2669
    // Predicated region
    $region18: #{lesets_att_forward.1} parent=1 // pred_check
      _
    $region19: #{lesets_att_forward.1} parent=1 // pred_check_branch
      %2673 = sbr.rel (0) target = $region21
    $region20: #{lesets_att_forward.1} parent=1 // pred_region
      %2675 = vsyncadd [#allocation4], 0
      %s2677 = sshll.u32 [#allocation5], 4
      %s2678 = int_to_ptr.vmem [resolvable:$true] %s2677
      %s2679 = sshll.u32 %s3, 4
      %s2680 = int_to_ptr.hbm [resolvable:$true] %s2679
      %2682 = dma.vmem_to_hbm [thread:$0]  %s2678, 16, %s2680, [#allocation4]
    $region21: #{lesets_att_forward.1} parent=1 // pred_fallthru
      _
    // Predicated region
    $region22: #{lesets_att_forward.1} parent=1 // pred_check
      _
    $region23: #{lesets_att_forward.1} parent=1 // pred_check_branch
      %2684 = sbr.rel (0) target = $region25
    $region24: #{lesets_att_forward.1} parent=1 // pred_region
      %2686 = dma.done [#allocation4], 16
    $region25: #{lesets_att_forward.1} parent=1 // pred_fallthru
      _
    %2687 = vsyncpa [#allocation3], 1
    %2688 = vsyncpa [#allocation4], 1

</llo_original>
